<compile_context>
chip_gen: v7x
topology: tpu7x:2x2x1
jax: 0.10.0
libtpu: 0.0.40
codegen_flags: <defaults>
</compile_context>

<pallas_src>
import functools

import jax
import jax.numpy as jnp
from jax.experimental import pallas as pl
from jax.experimental.pallas import tpu as pltpu

BN_EPS = 1e-5


def _round_up(x, m):
    return (x + m - 1) // m * m


def _block_vmem_bytes(shape, itemsize=4):
    """f32/bf16 VMEM footprint of a 2-D block padded to (8, 128) tiles."""
    r, c = shape[-2], shape[-1]
    return _round_up(r, 8) * _round_up(c, 128) * itemsize


def _vpu_conv_max_cin():
    """VPU-FMA vs MXU crossover for the k=1 conv contraction width.
    v6e/v7x's 256-wide MXU is even more under-utilized at tiny C than v5e's
    128-wide one, so the VPU path stays ahead longer there."""
    try:
        chip = str(pltpu.get_tpu_info().chip_version).lower()
    except Exception:
        return 32
    return 16 if "5" in chip else 32


def _vmem_limit_bytes(footprint):
    """Generation-aware VMEM cap: ~75% of physical capacity (128 MiB on
    v5e/v6e, 64 MiB on v7x), never below the footprint + headroom."""
    try:
        cap = int(pltpu.get_tpu_info().vmem_capacity_bytes)
    except Exception:
        cap = 64 << 20                       # conservative (v7x physical size)
    hi = (cap * 3) // 4
    return int(min(max(footprint + (2 << 20), 8 << 20), hi))


def _mixture_net_kernel(in_a_ref, in_b_ref, w_ref, p_ref,        # inputs
                        out_ref, act_ref,                         # outputs
                        hin_ref, hout_ref, stat_ref, dma_sem,     # scratch
                        *, channels, row_offs, n_actual, n_padded, tile_n,
                        n_phases, normalize, enable_activations, vpu_max_cin):
    """Grid = (layer, phase, n_tile).  Activations live as (C, tile_n):
    channels on sublanes, batch on the 128-wide lane axis (lane-dense stores).
    phase 0 (only when normalize): accumulate per-channel sum / sumsq.
    last phase: fold BN into scale/shift, normalize, ReLU, emit."""
    num_layers = len(channels) - 1
    layer = pl.program_id(0)
    phase = pl.program_id(1)
    tile = pl.program_id(2)
    out_phase = n_phases - 1
    inv_n = jnp.float32(1.0 / n_actual)

    padded = (n_padded != n_actual)          # static
    if padded:
        col = jax.lax.broadcasted_iota(jnp.int32, (1, tile_n), 1) + tile * tile_n
        valid = col < n_actual               # mask padded batch columns

    def conv(l_s, h_prev):
        """k=1 conv of layer l_s -> (C_out, tile_n) f32, lane-dense."""
        c_in, c_out = channels[l_s], channels[l_s + 1]
        r0 = row_offs[l_s]
        w = w_ref[r0:r0 + c_out, 0:c_in]                     # (C_out, C_in)
        if l_s == 0:
            x = (in_a_ref[...].astype(jnp.float32)
                 + in_b_ref[...].astype(jnp.float32))        # (tile_n, C_in)
            # Contracting the trailing C_in axis of both operands gives
            # (C_out, tile_n): the conv doubles as the (N,C)->(C,N) rotation.
            return jax.lax.dot_general(
                w, x, dimension_numbers=(((1,), (1,)), ((), ())),
                preferred_element_type=jnp.float32)
        h = h_prev[0:c_in, :]                                # (C_in, tile_n)
        if c_in <= vpu_max_cin:
            # Tiny contraction: C_in broadcasted VPU FMAs beat a <1%-utilized MXU.
            z = w[:, 0:1] * h[0:1, :]
            for ci in range(1, c_in):
                z = z + w[:, ci:ci + 1] * h[ci:ci + 1, :]
            return z
        return jnp.dot(w, h, preferred_element_type=jnp.float32)

    def run_layer(l_s):
        c_out = channels[l_s + 1]
        r0 = row_offs[l_s]
        last_layer = (l_s == num_layers - 1)

        if l_s > 0:
            # Previous layer's activations for this tile, staged in HBM.
            cp = pltpu.make_async_copy(act_ref.at[tile], hin_ref, dma_sem)
            cp.start()
            cp.wait()
            h_prev = hin_ref[...]
        else:
            h_prev = None

        z = conv(l_s, h_prev)                                # (C_out, tile_n)

        if normalize:
            @pl.when(phase == 0)
            def _stats():
                @pl.when(tile == 0)
                def _():
                    stat_ref[...] = jnp.zeros_like(stat_ref)
                zm = jnp.where(valid, z, 0.0) if padded else z
                # TODO(synk): fuse the two reductions into one XLU pass by
                # stacking [z; z*z] along sublanes.
                stat_ref[0:c_out, :] = (
                    stat_ref[0:c_out, :]
                    + jnp.sum(zm, axis=-1, keepdims=True))
                stat_ref[c_out:2 * c_out, :] = (
                    stat_ref[c_out:2 * c_out, :]
                    + jnp.sum(zm * zm, axis=-1, keepdims=True))

        @pl.when(phase == out_phase)
        def _emit():
            if normalize:
                @pl.when(tile == 0)
                def _():
                    # Fold BN into one scale/shift; reuse the stat rows in place.
                    s1 = stat_ref[0:c_out, :]
                    s2 = stat_ref[c_out:2 * c_out, :]
                    mean = s1 * inv_n
                    var = jnp.maximum(s2 * inv_n - mean * mean, 0.0)
                    gamma = p_ref[r0:r0 + c_out, 1:2]
                    beta = p_ref[r0:r0 + c_out, 2:3]
                    scale = gamma * jax.lax.rsqrt(var + BN_EPS)
                    stat_ref[0:c_out, :] = scale
                    stat_ref[c_out:2 * c_out, :] = beta - mean * scale
                h = z * stat_ref[0:c_out, :] + stat_ref[c_out:2 * c_out, :]
            else:
                h = z + p_ref[r0:r0 + c_out, 0:1]            # conv bias
            if enable_activations:
                h = jnp.maximum(h, 0.0)                      # ReLU
            if last_layer:
                out_ref[...] = h.astype(out_ref.dtype)       # lane-dense store
            else:
                hout_ref[0:c_out, :] = h
                cp = pltpu.make_async_copy(hout_ref, act_ref.at[tile], dma_sem)
                cp.start()
                cp.wait()

    for l_s in range(num_layers):
        pl.when(layer == l_s)(functools.partial(run_layer, l_s))


@functools.partial(jax.jit,
                   static_argnames=("channels", "row_offs", "normalize",
                                    "enable_activations", "tile_n_max"))
def mixture_net_forward(in_a, in_b, w_slab, p_slab, *, channels, row_offs,
                        normalize=True, enable_activations=True,
                        tile_n_max=1024):
    """in_a, in_b: (N, C_in), f32 or bf16.  Returns (N, C_out) in the input dtype."""
    n, c_in0 = in_a.shape
    assert c_in0 == channels[0] and in_a.shape == in_b.shape
    num_layers = len(channels) - 1
    c_out = channels[-1]
    out_dtype = in_a.dtype

    # Batch ("lane") tiling: pad N up to a multiple of 128, tile by <= tile_n_max.
    tile_n = min(_round_up(tile_n_max, 128), _round_up(n, 128))
    n_pad = _round_up(n, tile_n)
    n_tiles = n_pad // tile_n
    if n_pad != n:
        in_a = jnp.pad(in_a, ((0, n_pad - n), (0, 0)))
        in_b = jnp.pad(in_b, ((0, n_pad - n), (0, 0)))

    n_phases = 2 if normalize else 1
    ch_act = _round_up(max(channels[1:-1]) if num_layers > 1 else 1, 8)
    stat_rows = _round_up(2 * max(channels[1:]), 8)
    act_shape = (n_tiles, ch_act, tile_n) if num_layers > 1 else (1, 8, 128)

    kernel = functools.partial(
        _mixture_net_kernel,
        channels=channels, row_offs=row_offs,
        n_actual=n, n_padded=n_pad, tile_n=tile_n, n_phases=n_phases,
        normalize=normalize, enable_activations=enable_activations,
        vpu_max_cin=_vpu_conv_max_cin())

    # Inputs are only consumed by layer 0; weight/param slabs use a constant
    # index_map so they are DMA'd once and stay VMEM-resident across the grid.
    def ab_map(l, ph, i):
        return (jnp.where(l == 0, i, 0), 0)

    def out_map(l, ph, i):
        final = jnp.logical_and(l == num_layers - 1, ph == n_phases - 1)
        return (0, jnp.where(final, i, 0))

    in_specs = [
        pl.BlockSpec((tile_n, c_in0), ab_map),
        pl.BlockSpec((tile_n, c_in0), ab_map),
        pl.BlockSpec(w_slab.shape, lambda l, ph, i: (0, 0)),
        pl.BlockSpec(p_slab.shape, lambda l, ph, i: (0, 0)),
    ]
    out_specs = [
        pl.BlockSpec((c_out, tile_n), out_map),          # lane-dense output
        pl.BlockSpec(memory_space=pl.ANY),               # HBM activation staging
    ]
    out_shape = [
        jax.ShapeDtypeStruct((c_out, n_pad), out_dtype),
        jax.ShapeDtypeStruct(act_shape, jnp.float32),
    ]
    scratch_shapes = [
        pltpu.VMEM((ch_act, tile_n), jnp.float32),       # staged h_{l-1} tile
        pltpu.VMEM((ch_act, tile_n), jnp.float32),       # h_l tile to stage out
        pltpu.VMEM((stat_rows, 1), jnp.float32),         # sum/sumsq -> scale/shift
        pltpu.SemaphoreType.DMA(()),
    ]

    itemsize = jnp.dtype(out_dtype).itemsize
    footprint = (2 * 2 * _block_vmem_bytes((tile_n, c_in0), itemsize)
                 + 2 * _block_vmem_bytes((c_out, tile_n), itemsize)
                 + _block_vmem_bytes(w_slab.shape)
                 + _block_vmem_bytes(p_slab.shape)
                 + 2 * _block_vmem_bytes((ch_act, tile_n))
                 + _block_vmem_bytes((stat_rows, 1)))

    out_t, _ = pl.pallas_call(
        kernel,
        grid=(num_layers, n_phases, n_tiles),
        in_specs=in_specs,
        out_specs=out_specs,
        out_shape=out_shape,
        scratch_shapes=scratch_shapes,
        compiler_params=pltpu.CompilerParams(
            # BN statistics accumulate across N tiles in per-core scratch, so
            # the tile axis cannot be megacore-"parallel" without a cross-core
            # reduction.  TODO(synk): CMEM stat reduction to use v7x's 2nd core.
            dimension_semantics=("arbitrary", "arbitrary", "arbitrary"),
            vmem_limit_bytes=_vmem_limit_bytes(footprint),
        ),
    )(in_a, in_b, w_slab, p_slab)

    # Thin layout plumbing under the same jit: drop padding, back to (N, C_out).
    return out_t[:, :n].T


def make_mixture_net_params(key, in_channels, out_channels, depth, expansion):
    """Synthetic params mirroring the PyTorch module.  Per layer:
       (W (C_out, C_in), conv_bias (C_out,), bn_gamma (C_out,), bn_beta (C_out,))."""
    chs = ([in_channels]
           + [i * out_channels * expansion for i in range(1, depth)]
           + [out_channels])
    params = []
    for i in range(len(chs) - 1):
        cin, cout = chs[i], chs[i + 1]
        key, k_w, k_b = jax.random.split(key, 3)
        bound = 1.0 / (cin ** 0.5)
        w = jax.random.uniform(k_w, (cout, cin), jnp.float32, -bound, bound)
        bias = jax.random.uniform(k_b, (cout,), jnp.float32, -bound, bound)
        gamma = jnp.ones((cout,), jnp.float32)
        beta = jnp.zeros((cout,), jnp.float32)
        params.append((w, bias, gamma, beta))
    return params, tuple(chs)


def pack_mixture_net_params(params):
    """Pack all per-layer tensors into two slabs (one DMA each, VMEM-resident):
       w_slab: (sum_l rup8(C_out_l), max_l C_in_l)  zero-padded weights
       p_slab: (sum_l rup8(C_out_l), 3)             packed [bias, gamma, beta]
    plus the static (sublane-aligned) row offset of each layer in the slabs."""
    row_offs, off, max_cin = [], 0, 1
    for (w, _, _, _) in params:
        row_offs.append(off)
        off += _round_up(w.shape[0], 8)
        max_cin = max(max_cin, w.shape[1])
    w_slab = jnp.zeros((off, max_cin), jnp.float32)
    p_slab = jnp.zeros((off, 3), jnp.float32)
    for (w, b, g, be), r0 in zip(params, row_offs):
        co, ci = w.shape
        w_slab = w_slab.at[r0:r0 + co, 0:ci].set(w)
        p_slab = p_slab.at[r0:r0 + co, :].set(jnp.stack([b, g, be], axis=-1))
    return w_slab, p_slab, tuple(row_offs)


def mixture_net_reference(in_a, in_b, params, normalize=True,
                          enable_activations=True):
    """Pure-JAX reference in the original (N, C) layout, conv bias always applied."""
    h = in_a.astype(jnp.float32) + in_b.astype(jnp.float32)
    for (w, b, g, be) in params:
        h = h @ w.T + b                                  # Conv1d, k=1
        if normalize:
            mean = jnp.mean(h, axis=0, keepdims=True)
            var = jnp.mean((h - mean) ** 2, axis=0, keepdims=True)
            h = g * (h - mean) / jnp.sqrt(var + BN_EPS) + be
        if enable_activations:
            h = jnp.maximum(h, 0.0)
    return h


if __name__ == "__main__":
    # Module hyperparameters (consistent with MixtureNet.__init__).
    in_channels = 4
    out_channels = 4
    mixture_net_depth = 2
    mixture_net_expansion = 2

    key = jax.random.PRNGKey(0)
    key, k_a, k_b, k_p = jax.random.split(key, 4)

    params, channels = make_mixture_net_params(
        k_p, in_channels, out_channels, mixture_net_depth, mixture_net_expansion)
    w_slab, p_slab, row_offs = pack_mixture_net_params(params)

    def check(n, dtype=jnp.float32, tile_n_max=1024,
              normalize=True, acts=True, tol=1e-4):
        a = jax.random.normal(jax.random.fold_in(k_a, n), (n, in_channels),
                              jnp.float32).astype(dtype)
        b = jax.random.normal(jax.random.fold_in(k_b, n), (n, in_channels),
                              jnp.float32).astype(dtype)
        out = mixture_net_forward(a, b, w_slab, p_slab,
                                  channels=channels, row_offs=row_offs,
                                  normalize=normalize, enable_activations=acts,
                                  tile_n_max=tile_n_max)
        out = jax.block_until_ready(out)
        ref = mixture_net_reference(a, b, params,
                                    normalize=normalize, enable_activations=acts)
        assert out.shape == (n, out_channels), out.shape
        assert jnp.allclose(out.astype(jnp.float32), ref, atol=tol, rtol=tol), \
            (n, str(dtype), normalize, acts)

    check(256)                                  # aligned batch, single tile
    check(512, tile_n_max=128)                  # 4 tiles: cross-tile BN stats + HBM act staging
    check(200)                                  # unaligned batch: padding + masked statistics
    check(256, normalize=False, acts=False)     # conv-bias path (no BN / ReLU)
    check(256, dtype=jnp.bfloat16, tol=5e-2)    # bf16 I/O, f32 compute inside
    print("KERNEL_OK")
</pallas_src>

<mosaic_0001>
module attributes {stable_mosaic.version = 11 : i64} {
  func.func @_mixture_net_kernel(%arg0: i32, %arg1: i32, %arg2: i32, %arg3: memref<256x4xf32, #tpu.memory_space<vmem>>, %arg4: memref<256x4xf32, #tpu.memory_space<vmem>>, %arg5: memref<16x8xf32, #tpu.memory_space<vmem>>, %arg6: memref<16x3xf32, #tpu.memory_space<vmem>>, %arg7: memref<4x256xf32, #tpu.memory_space<vmem>>, %arg8: memref<1x8x256xf32, #tpu.memory_space<any>>, %arg9: memref<8x256xf32, #tpu.memory_space<vmem>>, %arg10: memref<8x256xf32, #tpu.memory_space<vmem>>, %arg11: memref<16x1xf32, #tpu.memory_space<vmem>>, %arg12: memref<!tpu.dma_semaphore, #tpu.memory_space<semaphore_mem>>) attributes {dimension_semantics = [#tpu.dimension_semantics<arbitrary>, #tpu.dimension_semantics<arbitrary>, #tpu.dimension_semantics<arbitrary>], iteration_bounds = array<i64: 2, 2, 1>, scalar_prefetch = 0 : i64, scratch_operands = 4 : i64, tpu.core_type = #tpu.core_type<tc>, window_params = [{transform_indices = @transform_0, window_bounds = array<i64: 256, 4>}, {transform_indices = @transform_1, window_bounds = array<i64: 256, 4>}, {pipeline_mode = #tpu.pipeline_mode<synchronous>, transform_indices = @transform_2, window_bounds = array<i64: 16, 8>}, {pipeline_mode = #tpu.pipeline_mode<synchronous>, transform_indices = @transform_3, window_bounds = array<i64: 16, 3>}, {transform_indices = @transform_4, window_bounds = array<i64: 4, 256>}, {}]} {
    %c0_i32 = arith.constant 0 : i32
    %0 = arith.cmpi eq, %arg0, %c0_i32 : i32
    %1 = arith.extui %0 : i1 to i32
    %cst = arith.constant 3.906250e-03 : f32
    %c0_i32_0 = arith.constant 0 : i32
    %2 = arith.cmpi ne, %1, %c0_i32_0 : i32
    scf.if %2 {
      %c0 = arith.constant 0 : index
      %c0_3 = arith.constant 0 : index
      %6 = vector.load %arg5[%c0, %c0_3] : memref<16x8xf32, #tpu.memory_space<vmem>>, vector<8x4xf32>
      %c0_4 = arith.constant 0 : index
      %c0_5 = arith.constant 0 : index
      %7 = vector.load %arg3[%c0_4, %c0_5] : memref<256x4xf32, #tpu.memory_space<vmem>>, vector<256x4xf32>
      %c0_6 = arith.constant 0 : index
      %c0_7 = arith.constant 0 : index
      %8 = vector.load %arg4[%c0_6, %c0_7] : memref<256x4xf32, #tpu.memory_space<vmem>>, vector<256x4xf32>
      %9 = arith.addf %7, %8 : vector<256x4xf32>
      %cst_8 = arith.constant dense<0.000000e+00> : vector<8x256xf32>
      %10 = tpu.matmul %6, %9, %cst_8 {dimension_numbers = #tpu.dot_dimension_numbers<[1], [1], [0], [0], [0, 0, 1, 0], [], []>} : vector<8x4xf32>, vector<256x4xf32>, vector<8x256xf32> -> vector<8x256xf32>
      %c0_i32_9 = arith.constant 0 : i32
      %11 = arith.cmpi eq, %arg1, %c0_i32_9 : i32
      %12 = arith.extui %11 : i1 to i32
      %c0_i32_10 = arith.constant 0 : i32
      %13 = arith.cmpi ne, %12, %c0_i32_10 : i32
      scf.if %13 {
        %c0_i32_13 = arith.constant 0 : i32
        %17 = arith.cmpi eq, %arg2, %c0_i32_13 : i32
        %18 = arith.extui %17 : i1 to i32
        %c0_i32_14 = arith.constant 0 : i32
        %19 = arith.cmpi ne, %18, %c0_i32_14 : i32
        scf.if %19 {
          %cst_24 = arith.constant 0.000000e+00 : f32
          %31 = vector.broadcast %cst_24 : f32 to vector<16x1xf32>
          %c0_25 = arith.constant 0 : index
          %c0_26 = arith.constant 0 : index
          %32 = vector.load %arg11[%c0_25, %c0_26] : memref<16x1xf32, #tpu.memory_space<vmem>>, vector<16x1xf32>
          tpu.vector_store %arg11[%c0_25, %c0_26], %31 {strides = array<i32>} : memref<16x1xf32, #tpu.memory_space<vmem>>, vector<16x1xf32>,
        } else {
        }
        %c0_15 = arith.constant 0 : index
        %c0_16 = arith.constant 0 : index
        %20 = vector.load %arg11[%c0_15, %c0_16] : memref<16x1xf32, #tpu.memory_space<vmem>>, vector<8x1xf32>
        %cst_17 = arith.constant dense<0.000000e+00> : vector<8xf32>
        %21 = vector.multi_reduction <add>, %10, %cst_17 [1] : vector<8x256xf32> to vector<8xf32>
        %22 = vector.shape_cast %21 : vector<8xf32> to vector<8x1xf32>
        %23 = arith.addf %20, %22 : vector<8x1xf32>
        %c0_18 = arith.constant 0 : index
        %c0_19 = arith.constant 0 : index
        %24 = vector.load %arg11[%c0_18, %c0_19] : memref<16x1xf32, #tpu.memory_space<vmem>>, vector<8x1xf32>
        tpu.vector_store %arg11[%c0_18, %c0_19], %23 {strides = array<i32>} : memref<16x1xf32, #tpu.memory_space<vmem>>, vector<8x1xf32>,
        %c8 = arith.constant 8 : index
        %c0_20 = arith.constant 0 : index
        %25 = vector.load %arg11[%c8, %c0_20] : memref<16x1xf32, #tpu.memory_space<vmem>>, vector<8x1xf32>
        %26 = arith.mulf %10, %10 : vector<8x256xf32>
        %cst_21 = arith.constant dense<0.000000e+00> : vector<8xf32>
        %27 = vector.multi_reduction <add>, %26, %cst_21 [1] : vector<8x256xf32> to vector<8xf32>
        %28 = vector.shape_cast %27 : vector<8xf32> to vector<8x1xf32>
        %29 = arith.addf %25, %28 : vector<8x1xf32>
        %c8_22 = arith.constant 8 : index
        %c0_23 = arith.constant 0 : index
        %30 = vector.load %arg11[%c8_22, %c0_23] : memref<16x1xf32, #tpu.memory_space<vmem>>, vector<8x1xf32>
        tpu.vector_store %arg11[%c8_22, %c0_23], %29 {strides = array<i32>} : memref<16x1xf32, #tpu.memory_space<vmem>>, vector<8x1xf32>,
      } else {
      }
      %c1_i32_11 = arith.constant 1 : i32
      %14 = arith.cmpi eq, %arg1, %c1_i32_11 : i32
      %15 = arith.extui %14 : i1 to i32
      %c0_i32_12 = arith.constant 0 : i32
      %16 = arith.cmpi ne, %15, %c0_i32_12 : i32
      scf.if %16 {
        %c0_i32_13 = arith.constant 0 : i32
        %17 = arith.cmpi eq, %arg2, %c0_i32_13 : i32
        %18 = arith.extui %17 : i1 to i32
        %c0_i32_14 = arith.constant 0 : i32
        %19 = arith.cmpi ne, %18, %c0_i32_14 : i32
        scf.if %19 {
          %c0_25 = arith.constant 0 : index
          %c0_26 = arith.constant 0 : index
          %33 = vector.load %arg11[%c0_25, %c0_26] : memref<16x1xf32, #tpu.memory_space<vmem>>, vector<8x1xf32>
          %c8_27 = arith.constant 8 : index
          %c0_28 = arith.constant 0 : index
          %34 = vector.load %arg11[%c8_27, %c0_28] : memref<16x1xf32, #tpu.memory_space<vmem>>, vector<8x1xf32>
          %35 = vector.broadcast %cst : f32 to vector<8x1xf32>
          %36 = arith.mulf %33, %35 : vector<8x1xf32>
          %37 = vector.broadcast %cst : f32 to vector<8x1xf32>
          %38 = arith.mulf %34, %37 : vector<8x1xf32>
          %39 = arith.mulf %36, %36 : vector<8x1xf32>
          %40 = arith.subf %38, %39 : vector<8x1xf32>
          %cst_29 = arith.constant 0.000000e+00 : f32
          %41 = vector.broadcast %cst_29 : f32 to vector<8x1xf32>
          %42 = arith.maximumf %40, %41 : vector<8x1xf32>
          %c0_30 = arith.constant 0 : index
          %c1 = arith.constant 1 : index
          %43 = vector.load %arg6[%c0_30, %c1] : memref<16x3xf32, #tpu.memory_space<vmem>>, vector<8x1xf32>
          %c0_31 = arith.constant 0 : index
          %c2 = arith.constant 2 : index
          %44 = vector.load %arg6[%c0_31, %c2] : memref<16x3xf32, #tpu.memory_space<vmem>>, vector<8x1xf32>
          %cst_32 = arith.constant 9.99999974E-6 : f32
          %45 = vector.broadcast %cst_32 : f32 to vector<8x1xf32>
          %46 = arith.addf %42, %45 : vector<8x1xf32>
          %47 = math.rsqrt %46 : vector<8x1xf32>
          %48 = arith.mulf %43, %47 : vector<8x1xf32>
          %c0_33 = arith.constant 0 : index
          %c0_34 = arith.constant 0 : index
          %49 = vector.load %arg11[%c0_33, %c0_34] : memref<16x1xf32, #tpu.memory_space<vmem>>, vector<8x1xf32>
          tpu.vector_store %arg11[%c0_33, %c0_34], %48 {strides = array<i32>} : memref<16x1xf32, #tpu.memory_space<vmem>>, vector<8x1xf32>,
          %50 = arith.mulf %36, %48 : vector<8x1xf32>
          %51 = arith.subf %44, %50 : vector<8x1xf32>
          %c8_35 = arith.constant 8 : index
          %c0_36 = arith.constant 0 : index
          %52 = vector.load %arg11[%c8_35, %c0_36] : memref<16x1xf32, #tpu.memory_space<vmem>>, vector<8x1xf32>
          tpu.vector_store %arg11[%c8_35, %c0_36], %51 {strides = array<i32>} : memref<16x1xf32, #tpu.memory_space<vmem>>, vector<8x1xf32>,
        } else {
        }
        %c0_15 = arith.constant 0 : index
        %c0_16 = arith.constant 0 : index
        %20 = vector.load %arg11[%c0_15, %c0_16] : memref<16x1xf32, #tpu.memory_space<vmem>>, vector<8x1xf32>
        %21 = vector.broadcast %20 : vector<8x1xf32> to vector<8x256xf32>
        %22 = arith.mulf %10, %21 : vector<8x256xf32>
        %c8 = arith.constant 8 : index
        %c0_17 = arith.constant 0 : index
        %23 = vector.load %arg11[%c8, %c0_17] : memref<16x1xf32, #tpu.memory_space<vmem>>, vector<8x1xf32>
        %24 = vector.broadcast %23 : vector<8x1xf32> to vector<8x256xf32>
        %25 = arith.addf %22, %24 : vector<8x256xf32>
        %cst_18 = arith.constant 0.000000e+00 : f32
        %26 = vector.broadcast %cst_18 : f32 to vector<8x256xf32>
        %27 = arith.maximumf %25, %26 : vector<8x256xf32>
        %c0_19 = arith.constant 0 : index
        %c0_20 = arith.constant 0 : index
        %28 = vector.load %arg10[%c0_19, %c0_20] : memref<8x256xf32, #tpu.memory_space<vmem>>, vector<8x256xf32>
        tpu.vector_store %arg10[%c0_19, %c0_20], %27 {strides = array<i32>} : memref<8x256xf32, #tpu.memory_space<vmem>>, vector<8x256xf32>,
        %c0_i32_21 = arith.constant 0 : i32
        %c0_i32_22 = arith.constant 0 : i32
        %29 = tpu.memref_slice %arg8[%arg2, %c0_i32_21, %c0_i32_22] : memref<1x8x256xf32, #tpu.memory_space<any>> -> memref<1x8x256xf32, #tpu.memory_space<any>>
        %30 = tpu.memref_squeeze %29 : memref<1x8x256xf32, #tpu.memory_space<any>> -> memref<8x256xf32, #tpu.memory_space<any>>
        tpu.enqueue_dma source(%arg10 : memref<8x256xf32, #tpu.memory_space<vmem>>) target(%30 : memref<8x256xf32, #tpu.memory_space<any>>) target_semaphore(%arg12 : memref<!tpu.dma_semaphore, #tpu.memory_space<semaphore_mem>>)
        %c0_i32_23 = arith.constant 0 : i32
        %c0_i32_24 = arith.constant 0 : i32
        %31 = tpu.memref_slice %arg8[%arg2, %c0_i32_23, %c0_i32_24] : memref<1x8x256xf32, #tpu.memory_space<any>> -> memref<1x8x256xf32, #tpu.memory_space<any>>
        %32 = tpu.memref_squeeze %31 : memref<1x8x256xf32, #tpu.memory_space<any>> -> memref<8x256xf32, #tpu.memory_space<any>>
        tpu.wait_dma2 semaphore(%arg12 : memref<!tpu.dma_semaphore, #tpu.memory_space<semaphore_mem>>) src(%arg10 : memref<8x256xf32, #tpu.memory_space<vmem>>) dst(%32 : memref<8x256xf32, #tpu.memory_space<any>>)
      } else {
      }
    } else {
    }
    %c1_i32 = arith.constant 1 : i32
    %3 = arith.cmpi eq, %arg0, %c1_i32 : i32
    %4 = arith.extui %3 : i1 to i32
    %cst_1 = arith.constant 3.906250e-03 : f32
    %c0_i32_2 = arith.constant 0 : i32
    %5 = arith.cmpi ne, %4, %c0_i32_2 : i32
    scf.if %5 {
      %c0_i32_3 = arith.constant 0 : i32
      %c0_i32_4 = arith.constant 0 : i32
      %6 = tpu.memref_slice %arg8[%arg2, %c0_i32_3, %c0_i32_4] : memref<1x8x256xf32, #tpu.memory_space<any>> -> memref<1x8x256xf32, #tpu.memory_space<any>>
      %7 = tpu.memref_squeeze %6 : memref<1x8x256xf32, #tpu.memory_space<any>> -> memref<8x256xf32, #tpu.memory_space<any>>
      tpu.enqueue_dma source(%7 : memref<8x256xf32, #tpu.memory_space<any>>) target(%arg9 : memref<8x256xf32, #tpu.memory_space<vmem>>) target_semaphore(%arg12 : memref<!tpu.dma_semaphore, #tpu.memory_space<semaphore_mem>>)
      %c0_i32_5 = arith.constant 0 : i32
      %c0_i32_6 = arith.constant 0 : i32
      %8 = tpu.memref_slice %arg8[%arg2, %c0_i32_5, %c0_i32_6] : memref<1x8x256xf32, #tpu.memory_space<any>> -> memref<1x8x256xf32, #tpu.memory_space<any>>
      %9 = tpu.memref_squeeze %8 : memref<1x8x256xf32, #tpu.memory_space<any>> -> memref<8x256xf32, #tpu.memory_space<any>>
      tpu.wait_dma2 semaphore(%arg12 : memref<!tpu.dma_semaphore, #tpu.memory_space<semaphore_mem>>) src(%9 : memref<8x256xf32, #tpu.memory_space<any>>) dst(%arg9 : memref<8x256xf32, #tpu.memory_space<vmem>>)
      %c0 = arith.constant 0 : index
      %c0_7 = arith.constant 0 : index
      %10 = vector.load %arg9[%c0, %c0_7] : memref<8x256xf32, #tpu.memory_space<vmem>>, vector<8x256xf32>
      %c8 = arith.constant 8 : index
      %c0_8 = arith.constant 0 : index
      %11 = vector.load %arg5[%c8, %c0_8] : memref<16x8xf32, #tpu.memory_space<vmem>>, vector<4x8xf32>
      %12 = vector.extract_strided_slice %11 {offsets = [0, 0], sizes = [4, 1], strides = [1, 1]} : vector<4x8xf32> to vector<4x1xf32>
      %13 = vector.extract_strided_slice %10 {offsets = [0, 0], sizes = [1, 256], strides = [1, 1]} : vector<8x256xf32> to vector<1x256xf32>
      %14 = vector.broadcast %12 : vector<4x1xf32> to vector<4x256xf32>
      %15 = vector.broadcast %13 : vector<1x256xf32> to vector<4x256xf32>
      %16 = arith.mulf %14, %15 : vector<4x256xf32>
      %17 = vector.extract_strided_slice %11 {offsets = [0, 1], sizes = [4, 1], strides = [1, 1]} : vector<4x8xf32> to vector<4x1xf32>
      %18 = vector.extract_strided_slice %10 {offsets = [1, 0], sizes = [1, 256], strides = [1, 1]} : vector<8x256xf32> to vector<1x256xf32>
      %19 = vector.broadcast %17 : vector<4x1xf32> to vector<4x256xf32>
      %20 = vector.broadcast %18 : vector<1x256xf32> to vector<4x256xf32>
      %21 = arith.mulf %19, %20 : vector<4x256xf32>
      %22 = arith.addf %16, %21 : vector<4x256xf32>
      %23 = vector.extract_strided_slice %11 {offsets = [0, 2], sizes = [4, 1], strides = [1, 1]} : vector<4x8xf32> to vector<4x1xf32>
      %24 = vector.extract_strided_slice %10 {offsets = [2, 0], sizes = [1, 256], strides = [1, 1]} : vector<8x256xf32> to vector<1x256xf32>
      %25 = vector.broadcast %23 : vector<4x1xf32> to vector<4x256xf32>
      %26 = vector.broadcast %24 : vector<1x256xf32> to vector<4x256xf32>
      %27 = arith.mulf %25, %26 : vector<4x256xf32>
      %28 = arith.addf %22, %27 : vector<4x256xf32>
      %29 = vector.extract_strided_slice %11 {offsets = [0, 3], sizes = [4, 1], strides = [1, 1]} : vector<4x8xf32> to vector<4x1xf32>
      %30 = vector.extract_strided_slice %10 {offsets = [3, 0], sizes = [1, 256], strides = [1, 1]} : vector<8x256xf32> to vector<1x256xf32>
      %31 = vector.broadcast %29 : vector<4x1xf32> to vector<4x256xf32>
      %32 = vector.broadcast %30 : vector<1x256xf32> to vector<4x256xf32>
      %33 = arith.mulf %31, %32 : vector<4x256xf32>
      %34 = arith.addf %28, %33 : vector<4x256xf32>
      %35 = vector.extract_strided_slice %11 {offsets = [0, 4], sizes = [4, 1], strides = [1, 1]} : vector<4x8xf32> to vector<4x1xf32>
      %36 = vector.extract_strided_slice %10 {offsets = [4, 0], sizes = [1, 256], strides = [1, 1]} : vector<8x256xf32> to vector<1x256xf32>
      %37 = vector.broadcast %35 : vector<4x1xf32> to vector<4x256xf32>
      %38 = vector.broadcast %36 : vector<1x256xf32> to vector<4x256xf32>
      %39 = arith.mulf %37, %38 : vector<4x256xf32>
      %40 = arith.addf %34, %39 : vector<4x256xf32>
      %41 = vector.extract_strided_slice %11 {offsets = [0, 5], sizes = [4, 1], strides = [1, 1]} : vector<4x8xf32> to vector<4x1xf32>
      %42 = vector.extract_strided_slice %10 {offsets = [5, 0], sizes = [1, 256], strides = [1, 1]} : vector<8x256xf32> to vector<1x256xf32>
      %43 = vector.broadcast %41 : vector<4x1xf32> to vector<4x256xf32>
      %44 = vector.broadcast %42 : vector<1x256xf32> to vector<4x256xf32>
      %45 = arith.mulf %43, %44 : vector<4x256xf32>
      %46 = arith.addf %40, %45 : vector<4x256xf32>
      %47 = vector.extract_strided_slice %11 {offsets = [0, 6], sizes = [4, 1], strides = [1, 1]} : vector<4x8xf32> to vector<4x1xf32>
      %48 = vector.extract_strided_slice %10 {offsets = [6, 0], sizes = [1, 256], strides = [1, 1]} : vector<8x256xf32> to vector<1x256xf32>
      %49 = vector.broadcast %47 : vector<4x1xf32> to vector<4x256xf32>
      %50 = vector.broadcast %48 : vector<1x256xf32> to vector<4x256xf32>
      %51 = arith.mulf %49, %50 : vector<4x256xf32>
      %52 = arith.addf %46, %51 : vector<4x256xf32>
      %53 = vector.extract_strided_slice %11 {offsets = [0, 7], sizes = [4, 1], strides = [1, 1]} : vector<4x8xf32> to vector<4x1xf32>
      %54 = vector.extract_strided_slice %10 {offsets = [7, 0], sizes = [1, 256], strides = [1, 1]} : vector<8x256xf32> to vector<1x256xf32>
      %55 = vector.broadcast %53 : vector<4x1xf32> to vector<4x256xf32>
      %56 = vector.broadcast %54 : vector<1x256xf32> to vector<4x256xf32>
      %57 = arith.mulf %55, %56 : vector<4x256xf32>
      %58 = arith.addf %52, %57 : vector<4x256xf32>
      %c0_i32_9 = arith.constant 0 : i32
      %59 = arith.cmpi eq, %arg1, %c0_i32_9 : i32
      %60 = arith.extui %59 : i1 to i32
      %c0_i32_10 = arith.constant 0 : i32
      %61 = arith.cmpi ne, %60, %c0_i32_10 : i32
      scf.if %61 {
        %c0_i32_13 = arith.constant 0 : i32
        %65 = arith.cmpi eq, %arg2, %c0_i32_13 : i32
        %66 = arith.extui %65 : i1 to i32
        %c0_i32_14 = arith.constant 0 : i32
        %67 = arith.cmpi ne, %66, %c0_i32_14 : i32
        scf.if %67 {
          %cst_24 = arith.constant 0.000000e+00 : f32
          %79 = vector.broadcast %cst_24 : f32 to vector<16x1xf32>
          %c0_25 = arith.constant 0 : index
          %c0_26 = arith.constant 0 : index
          %80 = vector.load %arg11[%c0_25, %c0_26] : memref<16x1xf32, #tpu.memory_space<vmem>>, vector<16x1xf32>
          tpu.vector_store %arg11[%c0_25, %c0_26], %79 {strides = array<i32>} : memref<16x1xf32, #tpu.memory_space<vmem>>, vector<16x1xf32>,
        } else {
        }
        %c0_15 = arith.constant 0 : index
        %c0_16 = arith.constant 0 : index
        %68 = vector.load %arg11[%c0_15, %c0_16] : memref<16x1xf32, #tpu.memory_space<vmem>>, vector<4x1xf32>
        %cst_17 = arith.constant dense<0.000000e+00> : vector<4xf32>
        %69 = vector.multi_reduction <add>, %58, %cst_17 [1] : vector<4x256xf32> to vector<4xf32>
        %70 = vector.shape_cast %69 : vector<4xf32> to vector<4x1xf32>
        %71 = arith.addf %68, %70 : vector<4x1xf32>
        %c0_18 = arith.constant 0 : index
        %c0_19 = arith.constant 0 : index
        %72 = vector.load %arg11[%c0_18, %c0_19] : memref<16x1xf32, #tpu.memory_space<vmem>>, vector<4x1xf32>
        tpu.vector_store %arg11[%c0_18, %c0_19], %71 {strides = array<i32>} : memref<16x1xf32, #tpu.memory_space<vmem>>, vector<4x1xf32>,
        %c4 = arith.constant 4 : index
        %c0_20 = arith.constant 0 : index
        %73 = vector.load %arg11[%c4, %c0_20] : memref<16x1xf32, #tpu.memory_space<vmem>>, vector<4x1xf32>
        %74 = arith.mulf %58, %58 : vector<4x256xf32>
        %cst_21 = arith.constant dense<0.000000e+00> : vector<4xf32>
        %75 = vector.multi_reduction <add>, %74, %cst_21 [1] : vector<4x256xf32> to vector<4xf32>
        %76 = vector.shape_cast %75 : vector<4xf32> to vector<4x1xf32>
        %77 = arith.addf %73, %76 : vector<4x1xf32>
        %c4_22 = arith.constant 4 : index
        %c0_23 = arith.constant 0 : index
        %78 = vector.load %arg11[%c4_22, %c0_23] : memref<16x1xf32, #tpu.memory_space<vmem>>, vector<4x1xf32>
        tpu.vector_store %arg11[%c4_22, %c0_23], %77 {strides = array<i32>} : memref<16x1xf32, #tpu.memory_space<vmem>>, vector<4x1xf32>,
      } else {
      }
      %c1_i32_11 = arith.constant 1 : i32
      %62 = arith.cmpi eq, %arg1, %c1_i32_11 : i32
      %63 = arith.extui %62 : i1 to i32
      %c0_i32_12 = arith.constant 0 : i32
      %64 = arith.cmpi ne, %63, %c0_i32_12 : i32
      scf.if %64 {
        %c0_i32_13 = arith.constant 0 : i32
        %65 = arith.cmpi eq, %arg2, %c0_i32_13 : i32
        %66 = arith.extui %65 : i1 to i32
        %c0_i32_14 = arith.constant 0 : i32
        %67 = arith.cmpi ne, %66, %c0_i32_14 : i32
        scf.if %67 {
          %c0_21 = arith.constant 0 : index
          %c0_22 = arith.constant 0 : index
          %77 = vector.load %arg11[%c0_21, %c0_22] : memref<16x1xf32, #tpu.memory_space<vmem>>, vector<4x1xf32>
          %c4_23 = arith.constant 4 : index
          %c0_24 = arith.constant 0 : index
          %78 = vector.load %arg11[%c4_23, %c0_24] : memref<16x1xf32, #tpu.memory_space<vmem>>, vector<4x1xf32>
          %79 = vector.broadcast %cst_1 : f32 to vector<4x1xf32>
          %80 = arith.mulf %77, %79 : vector<4x1xf32>
          %81 = vector.broadcast %cst_1 : f32 to vector<4x1xf32>
          %82 = arith.mulf %78, %81 : vector<4x1xf32>
          %83 = arith.mulf %80, %80 : vector<4x1xf32>
          %84 = arith.subf %82, %83 : vector<4x1xf32>
          %cst_25 = arith.constant 0.000000e+00 : f32
          %85 = vector.broadcast %cst_25 : f32 to vector<4x1xf32>
          %86 = arith.maximumf %84, %85 : vector<4x1xf32>
          %c8_26 = arith.constant 8 : index
          %c1 = arith.constant 1 : index
          %87 = vector.load %arg6[%c8_26, %c1] : memref<16x3xf32, #tpu.memory_space<vmem>>, vector<4x1xf32>
          %c8_27 = arith.constant 8 : index
          %c2 = arith.constant 2 : index
          %88 = vector.load %arg6[%c8_27, %c2] : memref<16x3xf32, #tpu.memory_space<vmem>>, vector<4x1xf32>
          %cst_28 = arith.constant 9.99999974E-6 : f32
          %89 = vector.broadcast %cst_28 : f32 to vector<4x1xf32>
          %90 = arith.addf %86, %89 : vector<4x1xf32>
          %91 = math.rsqrt %90 : vector<4x1xf32>
          %92 = arith.mulf %87, %91 : vector<4x1xf32>
          %c0_29 = arith.constant 0 : index
          %c0_30 = arith.constant 0 : index
          %93 = vector.load %arg11[%c0_29, %c0_30] : memref<16x1xf32, #tpu.memory_space<vmem>>, vector<4x1xf32>
          tpu.vector_store %arg11[%c0_29, %c0_30], %92 {strides = array<i32>} : memref<16x1xf32, #tpu.memory_space<vmem>>, vector<4x1xf32>,
          %94 = arith.mulf %80, %92 : vector<4x1xf32>
          %95 = arith.subf %88, %94 : vector<4x1xf32>
          %c4_31 = arith.constant 4 : index
          %c0_32 = arith.constant 0 : index
          %96 = vector.load %arg11[%c4_31, %c0_32] : memref<16x1xf32, #tpu.memory_space<vmem>>, vector<4x1xf32>
          tpu.vector_store %arg11[%c4_31, %c0_32], %95 {strides = array<i32>} : memref<16x1xf32, #tpu.memory_space<vmem>>, vector<4x1xf32>,
        } else {
        }
        %c0_15 = arith.constant 0 : index
        %c0_16 = arith.constant 0 : index
        %68 = vector.load %arg11[%c0_15, %c0_16] : memref<16x1xf32, #tpu.memory_space<vmem>>, vector<4x1xf32>
        %69 = vector.broadcast %68 : vector<4x1xf32> to vector<4x256xf32>
        %70 = arith.mulf %58, %69 : vector<4x256xf32>
        %c4 = arith.constant 4 : index
        %c0_17 = arith.constant 0 : index
        %71 = vector.load %arg11[%c4, %c0_17] : memref<16x1xf32, #tpu.memory_space<vmem>>, vector<4x1xf32>
        %72 = vector.broadcast %71 : vector<4x1xf32> to vector<4x256xf32>
        %73 = arith.addf %70, %72 : vector<4x256xf32>
        %cst_18 = arith.constant 0.000000e+00 : f32
        %74 = vector.broadcast %cst_18 : f32 to vector<4x256xf32>
        %75 = arith.maximumf %73, %74 : vector<4x256xf32>
        %c0_19 = arith.constant 0 : index
        %c0_20 = arith.constant 0 : index
        %76 = vector.load %arg7[%c0_19, %c0_20] : memref<4x256xf32, #tpu.memory_space<vmem>>, vector<4x256xf32>
        tpu.vector_store %arg7[%c0_19, %c0_20], %75 {strides = array<i32>} : memref<4x256xf32, #tpu.memory_space<vmem>>, vector<4x256xf32>,
      } else {
      }
    } else {
    }
    return
  }
  func.func @transform_0(%arg0: i32, %arg1: i32, %arg2: i32) -> (i32, i32) {
    %c0_i32 = arith.constant 0 : i32
    %0 = arith.cmpi eq, %arg0, %c0_i32 : i32
    %c0_i32_0 = arith.constant 0 : i32
    %1 = arith.select %0, %arg2, %c0_i32_0 : i32
    %c0_i32_1 = arith.constant 0 : i32
    %c0_i32_2 = arith.constant 0 : i32
    return %1, %c0_i32_1 : i32, i32
  }
  func.func @transform_1(%arg0: i32, %arg1: i32, %arg2: i32) -> (i32, i32) {
    %c0_i32 = arith.constant 0 : i32
    %0 = arith.cmpi eq, %arg0, %c0_i32 : i32
    %c0_i32_0 = arith.constant 0 : i32
    %1 = arith.select %0, %arg2, %c0_i32_0 : i32
    %c0_i32_1 = arith.constant 0 : i32
    %c0_i32_2 = arith.constant 0 : i32
    return %1, %c0_i32_1 : i32, i32
  }
  func.func @transform_2(%arg0: i32, %arg1: i32, %arg2: i32) -> (i32, i32) {
    %c0_i32 = arith.constant 0 : i32
    %c0_i32_0 = arith.constant 0 : i32
    %c0_i32_1 = arith.constant 0 : i32
    return %c0_i32, %c0_i32_0 : i32, i32
  }
  func.func @transform_3(%arg0: i32, %arg1: i32, %arg2: i32) -> (i32, i32) {
    %c0_i32 = arith.constant 0 : i32
    %c0_i32_0 = arith.constant 0 : i32
    %c0_i32_1 = arith.constant 0 : i32
    return %c0_i32, %c0_i32_0 : i32, i32
  }
  func.func @transform_4(%arg0: i32, %arg1: i32, %arg2: i32) -> (i32, i32) {
    %c1_i32 = arith.constant 1 : i32
    %0 = arith.cmpi eq, %arg0, %c1_i32 : i32
    %c1_i32_0 = arith.constant 1 : i32
    %1 = arith.cmpi eq, %arg1, %c1_i32_0 : i32
    %2 = arith.andi %0, %1 : i1
    %c0_i32 = arith.constant 0 : i32
    %3 = arith.select %2, %arg2, %c0_i32 : i32
    %c0_i32_1 = arith.constant 0 : i32
    %c0_i32_2 = arith.constant 0 : i32
    return %c0_i32_1, %3 : i32, i32
  }
}

</mosaic_0001>

<llo_original>
// kernel: mixture_net_forward.1
$region0: #{mixture_net_forward.1}
  #allocation0 [shape = 'u32[]', space=smem, size = 0x4, offset = 0x4, fixed_abs, tag = 'smem constant byte address 0x4 - core index']
  #allocation1 [shape = 'u32[144,128]{1,0:T(1,128)}', space=vmem, size = 0x12000, scoped, tag = 'internal scratch']
  #allocation2 [shape = 'f32[8,256]{1,0:T(8,128)}', space=vmem, size = 0x2000, scoped, tag = 'scratch operand']
  #allocation3 [shape = 'f32[8,256]{1,0:T(8,128)}', space=vmem, size = 0x2000, scoped, tag = 'scratch operand']
  #allocation4 [shape = 'f32[16,1]{1,0:T(8,128)}', space=vmem, size = 0x2000, scoped, tag = 'scratch operand']
  #allocation5 [shape = 's32[1]{0}', space=sflag, size = 0x4, scoped, tag = 'scratch operand']
  #allocation8 [shape = 's32[]', space=sflag, size = 0x4, offset = 0, fixed_abs, tag = 'sflag constant byte address 0x0 - dummy sync flag']
  #allocation9 [shape = 's32[]', space=sflag, size = 0x4, offset = 0, fixed_abs, tag = 'sflag constant byte address 0x0 - dummy sync flag']
  #allocation10 [shape = 'u32[]', space=smem, size = 0x4, offset = 0x44, fixed_abs, tag = 'smem constant byte address 0x44 - assertion arg 0']
  #allocation11 [shape = 'u32[]', space=smem, size = 0x4, offset = 0x48, fixed_abs, tag = 'smem constant byte address 0x48 - assertion arg 1']
  #allocation12 [shape = 's32[]', space=sflag, size = 0x4, offset = 0, fixed_abs, tag = 'sflag constant byte address 0x0 - dummy sync flag']
  #allocation13 [shape = 's32[]', space=sflag, size = 0x4, offset = 0, fixed_abs, tag = 'sflag constant byte address 0x0 - dummy sync flag']
  %s0 = inlined_call_operand.vmem [shape: f32[256,4], index: 0, kind: input, shape index: {}]
  %s1 = inlined_call_operand.vmem [shape: f32[256,4], index: 1, kind: input, shape index: {}]
  %s2 = inlined_call_operand.vmem [shape: f32[16,8], index: 2, kind: input, shape index: {}]
  %s3 = inlined_call_operand.vmem [shape: f32[16,3], index: 3, kind: input, shape index: {}]
  %s4 = inlined_call_operand.hbm [shape: f32[4,256], index: 4, kind: output, shape index: {0}]
  %s5 = inlined_call_operand.hbm [shape: f32[1,8,256], index: 5, kind: output, shape index: {1}]
  %6 = xla_tuple %s4, %s5
  %s7 = sld [smem:[#allocation0]]
  $region97: #{mixture_net_forward.1} parent=0
    _
  %s9 = ssub.s32 1, %s7
  %s10 = scalar_select 0, %s9, %s7
  $region1: #{mixture_net_forward.1} parent=0
    #allocation6 [shape = 'u8[8192]{0}', space=vmem, size = 0x2000, scoped, tag = 'output window, operand 0']
    #allocation7 [shape = 's32[2]{0}', space=sflag, size = 0x8, scoped, tag = 'scoped memory for mixture_net_forward.1']
    %11 = vsyncpa [#allocation7], 0
    %s12 = scalar_lea.sflag [#allocation7], 1
    %13 = vsyncpa %s12, 0
    loop: start=0, step=1, limit=6
    $region2: #{mixture_net_forward.1} parent=1 // loop_pre_header
      _
    $region3: #{mixture_net_forward.1} parent=1 // loop_header
      %s15 = sphi 0, %s19
      %p16 = scmp.ge.s32.totalorder %s15, 6
      %s22 = sphi 0, %s41
      %s23 = sphi 0, %s37
      %s24 = sphi 0, %s33
      %s25 = sphi 0, %s22
      %s26 = sphi 0, %s23
      %s27 = sphi 0, %s24
      %s28 = sphi 0, %s25
      %s29 = sphi 0, %s26
      %s30 = sphi 0, %s27
      %s48 = sphi 0, %s50
      %s51 = sphi 0, %s48
      %s52 = sphi 0, %s51
      %s68 = sphi 0, %s52
      %s78 = sphi 0, %s80
      %s81 = sphi 0, %s78
      %s82 = sphi 0, %s81
      %s98 = sphi 0, %s82
      %s102 = sphi 0, %s102
      %s104 = sphi 0, %s102
      %s105 = sphi 0, %s104
      %s119 = sphi 0, %s105
      %s123 = sphi 0, %s123
      %s125 = sphi 0, %s123
      %s126 = sphi 0, %s125
      %s140 = sphi 0, %s126
      %s156 = sphi 0, %s158
      %s159 = sphi 0, %s156
      %s160 = sphi 0, %s159
      %s176 = sphi 0, %s160
    $region4: #{mixture_net_forward.1} parent=1 // loop_header_branch
      %18 = sbr.rel (%p16) target = $region8
    $region5: #{mixture_net_forward.1} parent=1 // loop_body
      %s20 = ssub.s32 %s15, 1
      %s21 = ssub.s32 %s15, 2
      %s31 = sadd.s32 1, %s24
      %p32 = scmp.ge.s32.totalorder %s31, 1
      %s33 = scalar_select %p32, 0, %s31
      %s34 = sadd.s32 1, %s23
      %s35 = scalar_select %p32, %s34, %s23
      %p36 = scmp.ge.s32.totalorder %s35, 2
      %s37 = scalar_select %p36, 0, %s35
      %s38 = sadd.s32 1, %s22
      %s39 = scalar_select %p36, %s38, %s22
      %p40 = scmp.ge.s32.totalorder %s39, 2
      %s41 = scalar_select %p40, 0, %s39
      %p42 = scmp.eq.s32.totalorder %s22, 0
      %s43 = scalar_select %p42, %s24, 0
      %p44 = scmp.eq.s32.totalorder %s41, 0
      %s45 = scalar_select %p44, %s33, 0
      %s46 = ssub.s32 %s43, %s45
      %p47 = scmp.eq.s32.totalorder %s46, 0
      %s49 = sadd.s32 %s48, 1
      %s50 = scalar_select %p47, %s48, %s49
      %p53 = pneg %p47
      %p54 = scmp.eq.s32.totalorder %s15, 3
      %p55 = por %p53, %p54
      %p56 = scmp.ne.s32.totalorder %s48, %s51
      %p57 = scmp.eq.s32.totalorder %s15, 0
      %p58 = por %p56, %p57
      %p59 = scmp.ne.s32.totalorder %s48, %s51
      %p60 = scmp.eq.s32.totalorder %s20, 3
      %p61 = por %p59, %p60
      %p62 = scmp.ne.s32.totalorder %s51, %s52
      %p63 = scmp.eq.s32.totalorder %s20, 0
      %p64 = por %p62, %p63
      %p65 = scmp.ne.s32.totalorder %s51, %s52
      %p66 = scmp.eq.s32.totalorder %s21, 3
      %p67 = por %p65, %p66
      %p69 = scmp.ne.s32.totalorder %s52, %s68
      %p70 = scmp.eq.s32.totalorder %s21, 0
      %p71 = por %p69, %p70
      %p72 = scmp.eq.s32.totalorder %s22, 0
      %s73 = scalar_select %p72, %s24, 0
      %p74 = scmp.eq.s32.totalorder %s41, 0
      %s75 = scalar_select %p74, %s33, 0
      %s76 = ssub.s32 %s73, %s75
      %p77 = scmp.eq.s32.totalorder %s76, 0
      %s79 = sadd.s32 %s78, 1
      %s80 = scalar_select %p77, %s78, %s79
      %p83 = pneg %p77
      %p84 = scmp.eq.s32.totalorder %s15, 3
      %p85 = por %p83, %p84
      %p86 = scmp.ne.s32.totalorder %s78, %s81
      %p87 = scmp.eq.s32.totalorder %s15, 0
      %p88 = por %p86, %p87
      %p89 = scmp.ne.s32.totalorder %s78, %s81
      %p90 = scmp.eq.s32.totalorder %s20, 3
      %p91 = por %p89, %p90
      %p92 = scmp.ne.s32.totalorder %s81, %s82
      %p93 = scmp.eq.s32.totalorder %s20, 0
      %p94 = por %p92, %p93
      %p95 = scmp.ne.s32.totalorder %s81, %s82
      %p96 = scmp.eq.s32.totalorder %s21, 3
      %p97 = por %p95, %p96
      %p99 = scmp.ne.s32.totalorder %s82, %s98
      %p100 = scmp.eq.s32.totalorder %s21, 0
      %p101 = por %p99, %p100
      %s103 = sadd.s32 %s102, 1
      %p106 = scmp.eq.s32.totalorder %s15, 3
      %p107 = scmp.ne.s32.totalorder %s102, %s104
      %p108 = scmp.eq.s32.totalorder %s15, 0
      %p109 = por %p107, %p108
      %p110 = scmp.ne.s32.totalorder %s102, %s104
      %p111 = scmp.eq.s32.totalorder %s20, 3
      %p112 = por %p110, %p111
      %p113 = scmp.ne.s32.totalorder %s104, %s105
      %p114 = scmp.eq.s32.totalorder %s20, 0
      %p115 = por %p113, %p114
      %p116 = scmp.ne.s32.totalorder %s104, %s105
      %p117 = scmp.eq.s32.totalorder %s21, 3
      %p118 = por %p116, %p117
      %p120 = scmp.ne.s32.totalorder %s105, %s119
      %p121 = scmp.eq.s32.totalorder %s21, 0
      %p122 = por %p120, %p121
      %s124 = sadd.s32 %s123, 1
      %p127 = scmp.eq.s32.totalorder %s15, 3
      %p128 = scmp.ne.s32.totalorder %s123, %s125
      %p129 = scmp.eq.s32.totalorder %s15, 0
      %p130 = por %p128, %p129
      %p131 = scmp.ne.s32.totalorder %s123, %s125
      %p132 = scmp.eq.s32.totalorder %s20, 3
      %p133 = por %p131, %p132
      %p134 = scmp.ne.s32.totalorder %s125, %s126
      %p135 = scmp.eq.s32.totalorder %s20, 0
      %p136 = por %p134, %p135
      %p137 = scmp.ne.s32.totalorder %s125, %s126
      %p138 = scmp.eq.s32.totalorder %s21, 3
      %p139 = por %p137, %p138
      %p141 = scmp.ne.s32.totalorder %s126, %s140
      %p142 = scmp.eq.s32.totalorder %s21, 0
      %p143 = por %p141, %p142
      %p144 = scmp.eq.s32.totalorder %s22, 1
      %p145 = scmp.eq.s32.totalorder %s23, 1
      %p146 = pnand %p144, %p145
      %p147 = pneg %p146
      %s148 = scalar_select %p147, %s24, 0
      %p149 = scmp.eq.s32.totalorder %s41, 1
      %p150 = scmp.eq.s32.totalorder %s37, 1
      %p151 = pnand %p149, %p150
      %p152 = pneg %p151
      %s153 = scalar_select %p152, %s33, 0
      %s154 = ssub.s32 %s148, %s153
      %p155 = scmp.eq.s32.totalorder %s154, 0
      %s157 = sadd.s32 %s156, 1
      %s158 = scalar_select %p155, %s156, %s157
      %p161 = pneg %p155
      %p162 = scmp.eq.s32.totalorder %s15, 3
      %p163 = por %p161, %p162
      %p164 = scmp.ne.s32.totalorder %s156, %s159
      %p165 = scmp.eq.s32.totalorder %s15, 0
      %p166 = por %p164, %p165
      %p167 = scmp.ne.s32.totalorder %s156, %s159
      %p168 = scmp.eq.s32.totalorder %s20, 3
      %p169 = por %p167, %p168
      %p170 = scmp.ne.s32.totalorder %s159, %s160
      %p171 = scmp.eq.s32.totalorder %s20, 0
      %p172 = por %p170, %p171
      %p173 = scmp.ne.s32.totalorder %s159, %s160
      %p174 = scmp.eq.s32.totalorder %s21, 3
      %p175 = por %p173, %p174
      %p177 = scmp.ne.s32.totalorder %s160, %s176
      %p178 = scmp.eq.s32.totalorder %s21, 0
      %p179 = por %p177, %p178
      %p180 = scmp.le.s32.totalorder 1, %s15
      %p181 = scmp.lt.s32.totalorder %s15, 5
      %p182 = pnand %p180, %p181
      %p183 = pneg %p182
      // Predicated region
      $region9: #{mixture_net_forward.1} parent=5 // pred_check
        _
      $region10: #{mixture_net_forward.1} parent=5 // pred_check_branch
        %185 = sbr.rel (%p182) target = $region12
      $region11: #{mixture_net_forward.1} parent=5 // pred_region
        %s186 = ssub.s32 %s15, 1
        // Predicated region
        $region13: #{mixture_net_forward.1} parent=11 // pred_check
          %p187 = pneg %p115
        $region14: #{mixture_net_forward.1} parent=11 // pred_check_branch
          %189 = sbr.rel (%p187) target = $region16
        $region15: #{mixture_net_forward.1} parent=11 // pred_region
          _
        $region16: #{mixture_net_forward.1} parent=11 // pred_fallthru
          _
        // Predicated region
        $region17: #{mixture_net_forward.1} parent=11 // pred_check
          %p190 = pneg %p136
        $region18: #{mixture_net_forward.1} parent=11 // pred_check_branch
          %192 = sbr.rel (%p190) target = $region20
        $region19: #{mixture_net_forward.1} parent=11 // pred_region
          _
        $region20: #{mixture_net_forward.1} parent=11 // pred_fallthru
          _
      $region12: #{mixture_net_forward.1} parent=5 // pred_fallthru
        _
      %p193 = scmp.lt.s32.totalorder %s15, 4
      // Predicated region
      $region21: #{mixture_net_forward.1} parent=5 // pred_check
        %p194 = pneg %p193
      $region22: #{mixture_net_forward.1} parent=5 // pred_check_branch
        %196 = sbr.rel (%p194) target = $region24
      $region23: #{mixture_net_forward.1} parent=5 // pred_region
        // Predicated region
        $region25: #{mixture_net_forward.1} parent=23 // pred_check
          %p197 = pneg %p58
        $region26: #{mixture_net_forward.1} parent=23 // pred_check_branch
          %199 = sbr.rel (%p197) target = $region28
        $region27: #{mixture_net_forward.1} parent=23 // pred_region
          %p200 = scmp.eq.s32.totalorder %s22, 0
          %s201 = scalar_select %p200, %s24, 0
          %s202 = smul.u32 32, %s201
          %p203 = scmp.lt.s32.totalorder %s202, 31
          %s204 = scalar_select %p203, %s202, 31
          %s205 = smul.addr %s204, 8
          %s206 = scalar_lea.vmem %s0, %s205
          %p207 = scmp.eq.s32.totalorder %s22, 0
          %s208 = scalar_select %p207, %s24, 0
          %s209 = smul.u32 32, %s208
        $region28: #{mixture_net_forward.1} parent=23 // pred_fallthru
          _
        // Predicated region
        $region29: #{mixture_net_forward.1} parent=23 // pred_check
          %p210 = pneg %p88
        $region30: #{mixture_net_forward.1} parent=23 // pred_check_branch
          %212 = sbr.rel (%p210) target = $region32
        $region31: #{mixture_net_forward.1} parent=23 // pred_region
          %p213 = scmp.eq.s32.totalorder %s22, 0
          %s214 = scalar_select %p213, %s24, 0
          %s215 = smul.u32 32, %s214
          %p216 = scmp.lt.s32.totalorder %s215, 31
          %s217 = scalar_select %p216, %s215, 31
          %s218 = smul.addr %s217, 8
          %s219 = scalar_lea.vmem %s1, %s218
          %p220 = scmp.eq.s32.totalorder %s22, 0
          %s221 = scalar_select %p220, %s24, 0
          %s222 = smul.u32 32, %s221
        $region32: #{mixture_net_forward.1} parent=23 // pred_fallthru
          _
      $region24: #{mixture_net_forward.1} parent=5 // pred_fallthru
        _
      %p223 = scmp.le.s32.totalorder 1, %s15
      %p224 = scmp.lt.s32.totalorder %s15, 5
      %p225 = pnand %p223, %p224
      %p226 = pneg %p225
      // Predicated region
      $region33: #{mixture_net_forward.1} parent=5 // pred_check
        _
      $region34: #{mixture_net_forward.1} parent=5 // pred_check_branch
        %228 = sbr.rel (%p225) target = $region36
      $region35: #{mixture_net_forward.1} parent=5 // pred_region
        %s229 = ssub.s32 %s15, 1
        %p230 = scmp.eq.s32.totalorder %s25, 0
        %s231 = scalar_select %p230, %s27, 0
        %s232 = smul.u32 32, %s231
        %p233 = scmp.lt.s32.totalorder %s232, 31
        %s234 = scalar_select %p233, %s232, 31
        %s235 = smul.addr %s234, 8
        %s236 = scalar_lea.vmem %s0, %s235
        %p237 = pneg %p64
        %p238 = pneg %p61
        %p239 = scmp.eq.s32.totalorder %s25, 0
        %s240 = scalar_select %p239, %s27, 0
        %s241 = smul.u32 32, %s240
        %p242 = scmp.lt.s32.totalorder %s241, 31
        %s243 = scalar_select %p242, %s241, 31
        %s244 = smul.addr %s243, 8
        %s245 = scalar_lea.vmem %s1, %s244
        %p246 = pneg %p94
        %p247 = pneg %p91
        %p248 = pneg %p115
        %p249 = pneg %p112
        %p250 = pneg %p136
        %p251 = pneg %p133
        %p252 = pneg %p172
        %p253 = pneg %p169
        %s254 = sand.u32 %s159, 1
        %s255 = scalar_lea.sflag [#allocation7], %s254
        %s256 = sand.u32 %s159, 1
        %s257 = smul.addr %s256, 8
        %s258 = scalar_lea.vmem [#allocation6], %s257
        %p259 = scmp.eq.s32.totalorder %s25, 0
        %s260 = scalar_select %p259, %s27, 0
        %s261 = smul.u32 32, %s260
        %p262 = scmp.lt.s32.totalorder %s261, 31
        %s263 = scalar_select %p262, %s261, 31
        %s264 = smul.addr %s263, 8
        %s265 = scalar_lea.vmem %s0, %s264
        %p266 = scmp.eq.s32.totalorder %s25, 0
        %s267 = scalar_select %p266, %s27, 0
        %s268 = smul.u32 32, %s267
        %p269 = scmp.eq.s32.totalorder %s25, 0
        %s270 = scalar_select %p269, %s27, 0
        %s271 = smul.u32 32, %s270
        %p272 = scmp.lt.s32.totalorder %s271, 31
        %s273 = scalar_select %p272, %s271, 31
        %s274 = smul.addr %s273, 8
        %s275 = scalar_lea.vmem %s1, %s274
        %p276 = scmp.eq.s32.totalorder %s25, 0
        %s277 = scalar_select %p276, %s27, 0
        %s278 = smul.u32 32, %s277
        %p279 = scmp.eq.s32.totalorder %s25, 1
        %p280 = scmp.eq.s32.totalorder %s26, 1
        %p281 = pnand %p279, %p280
        %p282 = pneg %p281
        %s283 = scalar_select %p282, %s27, 0
        %s284 = smul.u32 2, %s283
        %p285 = scmp.eq.s32.totalorder %s25, 0
        // Predicated region
        $region37: #{mixture_net_forward.1} parent=35 // pred_check
          %p286 = pneg %p285
        $region38: #{mixture_net_forward.1} parent=35 // pred_check_branch
          %288 = sbr.rel (%p286) target = $region40
        $region39: #{mixture_net_forward.1} parent=35 // pred_region
          %v289 = vld [vmem:[%s2] sm:$0xff]
          %v290 = vld [vmem:[%s265] sm:$0xff]
          %v291 = vld [vmem:[%s265 + $0x8] sm:$0xff]
          %v292 = vld [vmem:[%s265 + $0x10] sm:$0xff]
          %v293 = vld [vmem:[%s265 + $0x18] sm:$0xff]
          %v294 = vld [vmem:[%s265 + $0x20] sm:$0xff]
          %v295 = vld [vmem:[%s265 + $0x28] sm:$0xff]
          %v296 = vld [vmem:[%s265 + $0x30] sm:$0xff]
          %v297 = vld [vmem:[%s265 + $0x38] sm:$0xff]
          %v298 = vld [vmem:[%s265 + $0x40] sm:$0xff]
          %v299 = vld [vmem:[%s265 + $0x48] sm:$0xff]
          %v300 = vld [vmem:[%s265 + $0x50] sm:$0xff]
          %v301 = vld [vmem:[%s265 + $0x58] sm:$0xff]
          %v302 = vld [vmem:[%s265 + $0x60] sm:$0xff]
          %v303 = vld [vmem:[%s265 + $0x68] sm:$0xff]
          %v304 = vld [vmem:[%s265 + $0x70] sm:$0xff]
          %v305 = vld [vmem:[%s265 + $0x78] sm:$0xff]
          %v306 = vld [vmem:[%s265 + $0x80] sm:$0xff]
          %v307 = vld [vmem:[%s265 + $0x88] sm:$0xff]
          %v308 = vld [vmem:[%s265 + $0x90] sm:$0xff]
          %v309 = vld [vmem:[%s265 + $0x98] sm:$0xff]
          %v310 = vld [vmem:[%s265 + $0xa0] sm:$0xff]
          %v311 = vld [vmem:[%s265 + $0xa8] sm:$0xff]
          %v312 = vld [vmem:[%s265 + $0xb0] sm:$0xff]
          %v313 = vld [vmem:[%s265 + $0xb8] sm:$0xff]
          %v314 = vld [vmem:[%s265 + $0xc0] sm:$0xff]
          %v315 = vld [vmem:[%s265 + $0xc8] sm:$0xff]
          %v316 = vld [vmem:[%s265 + $0xd0] sm:$0xff]
          %v317 = vld [vmem:[%s265 + $0xd8] sm:$0xff]
          %v318 = vld [vmem:[%s265 + $0xe0] sm:$0xff]
          %v319 = vld [vmem:[%s265 + $0xe8] sm:$0xff]
          %v320 = vld [vmem:[%s265 + $0xf0] sm:$0xff]
          %v321 = vld [vmem:[%s265 + $0xf8] sm:$0xff]
          %v322 = vld [vmem:[%s275] sm:$0xff]
          %v323 = vld [vmem:[%s275 + $0x8] sm:$0xff]
          %v324 = vld [vmem:[%s275 + $0x10] sm:$0xff]
          %v325 = vld [vmem:[%s275 + $0x18] sm:$0xff]
          %v326 = vld [vmem:[%s275 + $0x20] sm:$0xff]
          %v327 = vld [vmem:[%s275 + $0x28] sm:$0xff]
          %v328 = vld [vmem:[%s275 + $0x30] sm:$0xff]
          %v329 = vld [vmem:[%s275 + $0x38] sm:$0xff]
          %v330 = vld [vmem:[%s275 + $0x40] sm:$0xff]
          %v331 = vld [vmem:[%s275 + $0x48] sm:$0xff]
          %v332 = vld [vmem:[%s275 + $0x50] sm:$0xff]
          %v333 = vld [vmem:[%s275 + $0x58] sm:$0xff]
          %v334 = vld [vmem:[%s275 + $0x60] sm:$0xff]
          %v335 = vld [vmem:[%s275 + $0x68] sm:$0xff]
          %v336 = vld [vmem:[%s275 + $0x70] sm:$0xff]
          %v337 = vld [vmem:[%s275 + $0x78] sm:$0xff]
          %v338 = vld [vmem:[%s275 + $0x80] sm:$0xff]
          %v339 = vld [vmem:[%s275 + $0x88] sm:$0xff]
          %v340 = vld [vmem:[%s275 + $0x90] sm:$0xff]
          %v341 = vld [vmem:[%s275 + $0x98] sm:$0xff]
          %v342 = vld [vmem:[%s275 + $0xa0] sm:$0xff]
          %v343 = vld [vmem:[%s275 + $0xa8] sm:$0xff]
          %v344 = vld [vmem:[%s275 + $0xb0] sm:$0xff]
          %v345 = vld [vmem:[%s275 + $0xb8] sm:$0xff]
          %v346 = vld [vmem:[%s275 + $0xc0] sm:$0xff]
          %v347 = vld [vmem:[%s275 + $0xc8] sm:$0xff]
          %v348 = vld [vmem:[%s275 + $0xd0] sm:$0xff]
          %v349 = vld [vmem:[%s275 + $0xd8] sm:$0xff]
          %v350 = vld [vmem:[%s275 + $0xe0] sm:$0xff]
          %v351 = vld [vmem:[%s275 + $0xe8] sm:$0xff]
          %v352 = vld [vmem:[%s275 + $0xf0] sm:$0xff]
          %v353 = vld [vmem:[%s275 + $0xf8] sm:$0xff]
          %v354 = vadd.f32 %v290, %v322
          %v355 = vadd.f32 %v291, %v323
          %v356 = vadd.f32 %v292, %v324
          %v357 = vadd.f32 %v293, %v325
          %v358 = vadd.f32 %v294, %v326
          %v359 = vadd.f32 %v295, %v327
          %v360 = vadd.f32 %v296, %v328
          %v361 = vadd.f32 %v297, %v329
          %v362 = vadd.f32 %v298, %v330
          %v363 = vadd.f32 %v299, %v331
          %v364 = vadd.f32 %v300, %v332
          %v365 = vadd.f32 %v301, %v333
          %v366 = vadd.f32 %v302, %v334
          %v367 = vadd.f32 %v303, %v335
          %v368 = vadd.f32 %v304, %v336
          %v369 = vadd.f32 %v305, %v337
          %v370 = vadd.f32 %v306, %v338
          %v371 = vadd.f32 %v307, %v339
          %v372 = vadd.f32 %v308, %v340
          %v373 = vadd.f32 %v309, %v341
          %v374 = vadd.f32 %v310, %v342
          %v375 = vadd.f32 %v311, %v343
          %v376 = vadd.f32 %v312, %v344
          %v377 = vadd.f32 %v313, %v345
          %v378 = vadd.f32 %v314, %v346
          %v379 = vadd.f32 %v315, %v347
          %v380 = vadd.f32 %v316, %v348
          %v381 = vadd.f32 %v317, %v349
          %v382 = vadd.f32 %v318, %v350
          %v383 = vadd.f32 %v319, %v351
          %v384 = vadd.f32 %v320, %v352
          %v385 = vadd.f32 %v321, %v353
          %vm386 = vcmask 31744
          %v388 = vsel %vm386, %v289, 0
          %v391 = vsel %vm386, %v354, 0
          %v394 = vsel %vm386, %v355, 0
          %v397 = vsel %vm386, %v356, 0
          %v400 = vsel %vm386, %v357, 0
          %v403 = vsel %vm386, %v358, 0
          %v406 = vsel %vm386, %v359, 0
          %v409 = vsel %vm386, %v360, 0
          %v412 = vsel %vm386, %v361, 0
          %v415 = vsel %vm386, %v362, 0
          %v418 = vsel %vm386, %v363, 0
          %v421 = vsel %vm386, %v364, 0
          %v424 = vsel %vm386, %v365, 0
          %v427 = vsel %vm386, %v366, 0
          %v430 = vsel %vm386, %v367, 0
          %v433 = vsel %vm386, %v368, 0
          %v436 = vsel %vm386, %v369, 0
          %v439 = vsel %vm386, %v370, 0
          %v442 = vsel %vm386, %v371, 0
          %v445 = vsel %vm386, %v372, 0
          %v448 = vsel %vm386, %v373, 0
          %v451 = vsel %vm386, %v374, 0
          %v454 = vsel %vm386, %v375, 0
          %v457 = vsel %vm386, %v376, 0
          %v460 = vsel %vm386, %v377, 0
          %v463 = vsel %vm386, %v378, 0
          %v466 = vsel %vm386, %v379, 0
          %v469 = vsel %vm386, %v380, 0
          %v472 = vsel %vm386, %v381, 0
          %v475 = vsel %vm386, %v382, 0
          %v478 = vsel %vm386, %v383, 0
          %v481 = vsel %vm386, %v384, 0
          %v484 = vsel %vm386, %v385, 0
          %486 = vmatprep.subr.mxu0 0.0
          %487 = vmatpush1.xpose.msra.mxu0 %v391
          %488 = vmatprep.subr.mxu0 0.0
          %489 = vmatpush1.xpose.msra.mxu0 %v394
          %490 = vmatprep.subr.mxu0 0.0
          %491 = vmatpush1.xpose.msra.mxu0 %v397
          %492 = vmatprep.subr.mxu0 0.0
          %493 = vmatpush1.xpose.msra.mxu0 %v400
          %494 = vmatprep.subr.mxu0 0.0
          %495 = vmatpush1.xpose.msra.mxu0 %v403
          %496 = vmatprep.subr.mxu0 0.0
          %497 = vmatpush1.xpose.msra.mxu0 %v406
          %498 = vmatprep.subr.mxu0 0.0
          %499 = vmatpush1.xpose.msra.mxu0 %v409
          %500 = vmatprep.subr.mxu0 0.0
          %501 = vmatpush1.xpose.msra.mxu0 %v412
          %502 = vmatprep.subr.mxu0 0.0
          %503 = vmatpush1.xpose.msra.mxu0 %v415
          %504 = vmatprep.subr.mxu0 0.0
          %505 = vmatpush1.xpose.msra.mxu0 %v418
          %506 = vmatprep.subr.mxu0 0.0
          %507 = vmatpush1.xpose.msra.mxu0 %v421
          %508 = vmatprep.subr.mxu0 0.0
          %509 = vmatpush1.xpose.msra.mxu0 %v424
          %510 = vmatprep.subr.mxu0 0.0
          %511 = vmatpush1.xpose.msra.mxu0 %v427
          %512 = vmatprep.subr.mxu0 0.0
          %513 = vmatpush1.xpose.msra.mxu0 %v430
          %514 = vmatprep.subr.mxu0 0.0
          %515 = vmatpush1.xpose.msra.mxu0 %v433
          %516 = vmatprep.subr.mxu0 0.0
          %517 = vmatpush1.xpose.msra.mxu0 %v436
          %518 = vmatprep.subr.mxu0 0.0
          %519 = vmatpush1.xpose.msra.mxu0 %v439
          %520 = vmatprep.subr.mxu0 0.0
          %521 = vmatpush1.xpose.msra.mxu0 %v442
          %522 = vmatprep.subr.mxu0 0.0
          %523 = vmatpush1.xpose.msra.mxu0 %v445
          %524 = vmatprep.subr.mxu0 0.0
          %525 = vmatpush1.xpose.msra.mxu0 %v448
          %526 = vmatprep.subr.mxu0 0.0
          %527 = vmatpush1.xpose.msra.mxu0 %v451
          %528 = vmatprep.subr.mxu0 0.0
          %529 = vmatpush1.xpose.msra.mxu0 %v454
          %530 = vmatprep.subr.mxu0 0.0
          %531 = vmatpush1.xpose.msra.mxu0 %v457
          %532 = vmatprep.subr.mxu0 0.0
          %533 = vmatpush1.xpose.msra.mxu0 %v460
          %534 = vmatprep.subr.mxu0 0.0
          %535 = vmatpush1.xpose.msra.mxu0 %v463
          %536 = vmatprep.subr.mxu0 0.0
          %537 = vmatpush1.xpose.msra.mxu0 %v466
          %538 = vmatprep.subr.mxu0 0.0
          %539 = vmatpush1.xpose.msra.mxu0 %v469
          %540 = vmatprep.subr.mxu0 0.0
          %541 = vmatpush1.xpose.msra.mxu0 %v472
          %542 = vmatprep.subr.mxu0 0.0
          %543 = vmatpush1.xpose.msra.mxu0 %v475
          %544 = vmatprep.subr.mxu0 0.0
          %545 = vmatpush1.xpose.msra.mxu0 %v478
          %546 = vmatprep.subr.mxu0 0.0
          %547 = vmatpush1.xpose.msra.mxu0 %v481
          %548 = vmatprep.subr.mxu0 0.0
          %549 = vmatpush1.xpose.msra.mxu0 %v484
          %550 = vmatprep.mubr.f32.mxu0 0.0
          %551 = vmatmul.mubr.f32.gmra.mrb[0].mxu0 %v388
          %v552 = vpop.f32.mrb[0].mxu0
          %v553 = vadd.f32 0.0, %v552
          %v554 = vpop.f32.mrb[0].mxu0
          %v555 = vadd.f32 0.0, %v554
          %556 = vdwg.mxu0
          %p557 = scmp.eq.s32.totalorder %s26, 0
          // Predicated region
          $region41: #{mixture_net_forward.1} parent=39 // pred_check
            %p558 = pneg %p557
          $region42: #{mixture_net_forward.1} parent=39 // pred_check_branch
            %560 = sbr.rel (%p558) target = $region44
          $region43: #{mixture_net_forward.1} parent=39 // pred_region
            %p561 = scmp.eq.s32.totalorder %s27, 0
            // Predicated region
            $region45: #{mixture_net_forward.1} parent=43 // pred_check
              %p562 = pneg %p561
            $region46: #{mixture_net_forward.1} parent=43 // pred_check_branch
              %564 = sbr.rel (%p562) target = $region48
            $region47: #{mixture_net_forward.1} parent=43 // pred_region
              %vm565 = vcmask 7168
              %566 = vst.msk [vmem:[#allocation4] sm:$0xff] %vm565, 0.0
              %567 = vst.msk [vmem:[#allocation4 + $0x8] sm:$0xff] %vm565, 0.0
            $region48: #{mixture_net_forward.1} parent=43 // pred_fallthru
              _
            %v568 = vld [vmem:[#allocation4] sm:$0xff]
            %v569 = vadd.f32 %v553, %v555
            %570 = vadd.xlane.f32.xlu0 %v569
            %v571 = vpop.xlane.xlu0 %570
            %v572 = vadd.f32 %v568, %v571
            %vm573 = vcmask 7168
            %574 = vst.msk [vmem:[#allocation4] sm:$0xff] %vm573, %v572
            %v575 = vld [vmem:[#allocation4 + $0x8] sm:$0xff]
            %v576 = vmul.f32 %v553, %v553
            %v577 = vmul.f32 %v555, %v555
            %v578 = vadd.f32 %v576, %v577
            %579 = vadd.xlane.f32.xlu0 %v578
            %v580 = vpop.xlane.xlu0 %579
            %v581 = vadd.f32 %v575, %v580
            %582 = vst.msk [vmem:[#allocation4 + $0x8] sm:$0xff] %vm573, %v581
          $region44: #{mixture_net_forward.1} parent=39 // pred_fallthru
            _
          %p583 = scmp.eq.s32.totalorder %s26, 1
          // Predicated region
          $region49: #{mixture_net_forward.1} parent=39 // pred_check
            %p584 = pneg %p583
          $region50: #{mixture_net_forward.1} parent=39 // pred_check_branch
            %586 = sbr.rel (%p584) target = $region52
          $region51: #{mixture_net_forward.1} parent=39 // pred_region
            %p587 = scmp.eq.s32.totalorder %s27, 0
            // Predicated region
            $region53: #{mixture_net_forward.1} parent=51 // pred_check
              %p588 = pneg %p587
            $region54: #{mixture_net_forward.1} parent=51 // pred_check_branch
              %590 = sbr.rel (%p588) target = $region56
            $region55: #{mixture_net_forward.1} parent=51 // pred_region
              %v591 = vld [vmem:[#allocation4] sm:$0xff]
              %v592 = vld [vmem:[#allocation4 + $0x8] sm:$0xff]
              %v593 = vmul.f32 %v591, 0.00390625
              %v594 = vmul.f32 %v592, 0.00390625
              %v595 = vmul.f32 %v593, %v593
              %v596 = vsub.f32 %v594, %v595
              %v597 = vmax.f32 %v596, 0.0
              %v598 = vld [vmem:[%s3] sm:$0xff]
              %v599 = vadd.f32 %v597, 1e-05
              %v600 = vrsqrt.pop %v599
              %602 = vrot.lane.b32.xlu0 %v600, 1
              %v603 = vpop.permute.xlu0 %602
              %v605 = vmul.f32 %v598, %v603
              %607 = vrot.lane.b32.xlu0 %v605, 127
              %v608 = vpop.permute.xlu0 %607
              %vm610 = vcmask 7168
              %611 = vst.msk [vmem:[#allocation4] sm:$0xff] %vm610, %v608
              %v612 = vmul.f32 %v593, %v608
              %614 = vrot.lane.b32.xlu0 %v612, 2
              %v615 = vpop.permute.xlu0 %614
              %v617 = vsub.f32 %v598, %v615
              %619 = vrot.lane.b32.xlu0 %v617, 126
              %v620 = vpop.permute.xlu0 %619
              %622 = vst.msk [vmem:[#allocation4 + $0x8] sm:$0xff] %vm610, %v620
            $region56: #{mixture_net_forward.1} parent=51 // pred_fallthru
              _
            %v623 = vld [vmem:[#allocation4] sm:$0xff]
            %625 = vset.pattern.permute.xlu0 0
            %626 = vperm.xlu0 %625, %v623
            %v627 = vpop.permute.xlu0 %626
            %v629 = vmul.f32 %v553, %v627
            %v630 = vmul.f32 %v555, %v627
            %v631 = vld [vmem:[#allocation4 + $0x8] sm:$0xff]
            %633 = vset.pattern.permute.xlu0 0
            %634 = vperm.xlu0 %633, %v631
            %v635 = vpop.permute.xlu0 %634
            %v637 = vadd.f32 %v629, %v635
            %v638 = vadd.f32 %v630, %v635
            %v639 = vmax.f32 %v637, 0.0
            %v640 = vmax.f32 %v638, 0.0
            %641 = vst [vmem:[#allocation3] sm:$0xff] %v639
            %642 = vst [vmem:[#allocation3 + $0x8] sm:$0xff] %v640
            %s643 = smul.u32 %s27, 2
            %s644 = smul.addr %s643, 128
            %s645 = scalar_lea.hbm %s5, %s644
            // Predicated region
            $region57: #{mixture_net_forward.1} parent=51 // pred_check
              _
            $region58: #{mixture_net_forward.1} parent=51 // pred_check_branch
              %647 = sbr.rel target = $region60
            $region59: #{mixture_net_forward.1} parent=51 // pred_region
              %648 = sst [smem:[#allocation10]] [#allocation9]
              %649 = sst [smem:[#allocation11]] [#allocation8]
            $region60: #{mixture_net_forward.1} parent=51 // pred_fallthru
              _
            %651 = shalt.err (0)
            %s653 = sshll.u32 [#allocation3], 4
            %s654 = int_to_ptr.vmem [resolvable:$true] %s653
            %656 = dma.vmem_to_hbm [thread:$0]  %s654, 256, %s645, [#allocation5]
            %s657 = smul.u32 8, 1
            %s658 = smul.u32 %s657, 2
            %s659 = sshll.u32 %s658, 4
            %660 = dma.done [#allocation5], %s659
          $region52: #{mixture_net_forward.1} parent=39 // pred_fallthru
            _
        $region40: #{mixture_net_forward.1} parent=35 // pred_fallthru
          _
        %p661 = scmp.eq.s32.totalorder %s25, 1
        // Predicated region
        $region61: #{mixture_net_forward.1} parent=35 // pred_check
          %p662 = pneg %p661
        $region62: #{mixture_net_forward.1} parent=35 // pred_check_branch
          %664 = sbr.rel (%p662) target = $region64
        $region63: #{mixture_net_forward.1} parent=35 // pred_region
          %s665 = smul.u32 %s27, 2
          %s666 = smul.addr %s665, 128
          %s667 = scalar_lea.hbm %s5, %s666
          // Predicated region
          $region65: #{mixture_net_forward.1} parent=63 // pred_check
            _
          $region66: #{mixture_net_forward.1} parent=63 // pred_check_branch
            %669 = sbr.rel target = $region68
          $region67: #{mixture_net_forward.1} parent=63 // pred_region
            %670 = sst [smem:[#allocation10]] [#allocation13]
            %671 = sst [smem:[#allocation11]] [#allocation12]
          $region68: #{mixture_net_forward.1} parent=63 // pred_fallthru
            _
          %673 = shalt.err (0)
          %s675 = sshll.u32 [#allocation2], 4
          %s676 = int_to_ptr.vmem [resolvable:$true] %s675
          %678 = dma.hbm_to_vmem [thread:$0]  %s667, 256, %s676, [#allocation5]
          %s679 = smul.u32 8, 1
          %s680 = smul.u32 %s679, 2
          %s681 = sshll.u32 %s680, 4
          %682 = dma.done [#allocation5], %s681
          %v683 = vld [vmem:[#allocation2] sm:$0xff]
          %v684 = vld [vmem:[#allocation2 + $0x8] sm:$0xff]
          %v685 = vld [vmem:[%s2 + $0x8] sm:$0xf]
          %687 = vset.pattern.permute.xlu0 0
          %688 = vperm.xlu0 %687, %v685
          %v689 = vpop.permute.xlu0 %688
          %v691 = vlaneseq
          %v692 = vshrl.u32 %v691, 7
          %v693 = vsub.s32 0, %v692
          %v694 = vrot.slane %v683, %v693
          %v695 = vlaneseq
          %v696 = vshrl.u32 %v695, 7
          %v697 = vsub.s32 0, %v696
          %v698 = vrot.slane %v684, %v697
          %v699 = vmul.f32 %v689, %v694
          %v700 = vmul.f32 %v689, %v698
          %701 = vset.pattern.permute.xlu0 1
          %702 = vperm.xlu0 %701, %v685
          %v703 = vpop.permute.xlu0 %702
          %v705 = vlaneseq
          %v706 = vshrl.u32 %v705, 7
          %v707 = vsub.s32 1, %v706
          %v708 = vrot.slane %v683, %v707
          %v709 = vlaneseq
          %v710 = vshrl.u32 %v709, 7
          %v711 = vsub.s32 1, %v710
          %v712 = vrot.slane %v684, %v711
          %v713 = vmul.f32 %v703, %v708
          %v714 = vmul.f32 %v703, %v712
          %v715 = vadd.f32 %v699, %v713
          %v716 = vadd.f32 %v700, %v714
          %717 = vset.pattern.permute.xlu0 2
          %718 = vperm.xlu0 %717, %v685
          %v719 = vpop.permute.xlu0 %718
          %v721 = vlaneseq
          %v722 = vshrl.u32 %v721, 7
          %v723 = vsub.s32 2, %v722
          %v724 = vrot.slane %v683, %v723
          %v725 = vlaneseq
          %v726 = vshrl.u32 %v725, 7
          %v727 = vsub.s32 2, %v726
          %v728 = vrot.slane %v684, %v727
          %v729 = vmul.f32 %v719, %v724
          %v730 = vmul.f32 %v719, %v728
          %v731 = vadd.f32 %v715, %v729
          %v732 = vadd.f32 %v716, %v730
          %733 = vset.pattern.permute.xlu0 3
          %734 = vperm.xlu0 %733, %v685
          %v735 = vpop.permute.xlu0 %734
          %v737 = vlaneseq
          %v738 = vshrl.u32 %v737, 7
          %v739 = vsub.s32 3, %v738
          %v740 = vrot.slane %v683, %v739
          %v741 = vlaneseq
          %v742 = vshrl.u32 %v741, 7
          %v743 = vsub.s32 3, %v742
          %v744 = vrot.slane %v684, %v743
          %v745 = vmul.f32 %v735, %v740
          %v746 = vmul.f32 %v735, %v744
          %v747 = vadd.f32 %v731, %v745
          %v748 = vadd.f32 %v732, %v746
          %749 = vset.pattern.permute.xlu0 4
          %750 = vperm.xlu0 %749, %v685
          %v751 = vpop.permute.xlu0 %750
          %v753 = vlaneseq
          %v754 = vshrl.u32 %v753, 7
          %v755 = vsub.s32 4, %v754
          %v756 = vrot.slane %v683, %v755
          %v757 = vlaneseq
          %v758 = vshrl.u32 %v757, 7
          %v759 = vsub.s32 4, %v758
          %v760 = vrot.slane %v684, %v759
          %v761 = vmul.f32 %v751, %v756
          %v762 = vmul.f32 %v751, %v760
          %v763 = vadd.f32 %v747, %v761
          %v764 = vadd.f32 %v748, %v762
          %765 = vset.pattern.permute.xlu0 5
          %766 = vperm.xlu0 %765, %v685
          %v767 = vpop.permute.xlu0 %766
          %v769 = vlaneseq
          %v770 = vshrl.u32 %v769, 7
          %v771 = vsub.s32 5, %v770
          %v772 = vrot.slane %v683, %v771
          %v773 = vlaneseq
          %v774 = vshrl.u32 %v773, 7
          %v775 = vsub.s32 5, %v774
          %v776 = vrot.slane %v684, %v775
          %v777 = vmul.f32 %v767, %v772
          %v778 = vmul.f32 %v767, %v776
          %v779 = vadd.f32 %v763, %v777
          %v780 = vadd.f32 %v764, %v778
          %781 = vset.pattern.permute.xlu0 6
          %782 = vperm.xlu0 %781, %v685
          %v783 = vpop.permute.xlu0 %782
          %v785 = vlaneseq
          %v786 = vshrl.u32 %v785, 7
          %v787 = vsub.s32 6, %v786
          %v788 = vrot.slane %v683, %v787
          %v789 = vlaneseq
          %v790 = vshrl.u32 %v789, 7
          %v791 = vsub.s32 6, %v790
          %v792 = vrot.slane %v684, %v791
          %v793 = vmul.f32 %v783, %v788
          %v794 = vmul.f32 %v783, %v792
          %v795 = vadd.f32 %v779, %v793
          %v796 = vadd.f32 %v780, %v794
          %797 = vset.pattern.permute.xlu0 7
          %798 = vperm.xlu0 %797, %v685
          %v799 = vpop.permute.xlu0 %798
          %v801 = vlaneseq
          %v802 = vshrl.u32 %v801, 7
          %v803 = vsub.s32 7, %v802
          %v804 = vrot.slane %v683, %v803
          %v805 = vlaneseq
          %v806 = vshrl.u32 %v805, 7
          %v807 = vsub.s32 7, %v806
          %v808 = vrot.slane %v684, %v807
          %v809 = vmul.f32 %v799, %v804
          %v810 = vmul.f32 %v799, %v808
          %v811 = vadd.f32 %v795, %v809
          %v812 = vadd.f32 %v796, %v810
          %p813 = scmp.eq.s32.totalorder %s26, 0
          // Predicated region
          $region69: #{mixture_net_forward.1} parent=63 // pred_check
            %p814 = pneg %p813
          $region70: #{mixture_net_forward.1} parent=63 // pred_check_branch
            %816 = sbr.rel (%p814) target = $region72
          $region71: #{mixture_net_forward.1} parent=63 // pred_region
            %p817 = scmp.eq.s32.totalorder %s27, 0
            // Predicated region
            $region73: #{mixture_net_forward.1} parent=71 // pred_check
              %p818 = pneg %p817
            $region74: #{mixture_net_forward.1} parent=71 // pred_check_branch
              %820 = sbr.rel (%p818) target = $region76
            $region75: #{mixture_net_forward.1} parent=71 // pred_region
              %vm821 = vcmask 7168
              %822 = vst.msk [vmem:[#allocation4] sm:$0xff] %vm821, 0.0
              %823 = vst.msk [vmem:[#allocation4 + $0x8] sm:$0xff] %vm821, 0.0
            $region76: #{mixture_net_forward.1} parent=71 // pred_fallthru
              _
            %v824 = vld [vmem:[#allocation4] sm:$0xf]
            %vm825 = vcmask 1043456
            %v826 = vsel %vm825, %v811, 0.0
            %v827 = vsel %vm825, %v812, 0.0
            %v828 = vadd.f32 %v826, %v827
            %829 = vadd.xlane.f32.xlu0 %v828
            %v830 = vpop.xlane.xlu0 %829
            %v831 = vadd.f32 %v824, %v830
            %vm832 = vcmask 3072
            %833 = vst.msk [vmem:[#allocation4] sm:$0xf] %vm832, %v831
            %v834 = vld [vmem:[#allocation4 + $0x4] sm:$0xf]
            %v835 = vmul.f32 %v811, %v811
            %v836 = vmul.f32 %v812, %v812
            %v837 = vsel %vm825, %v835, 0.0
            %v838 = vsel %vm825, %v836, 0.0
            %v839 = vadd.f32 %v837, %v838
            %840 = vadd.xlane.f32.xlu0 %v839
            %v841 = vpop.xlane.xlu0 %840
            %v842 = vadd.f32 %v834, %v841
            %843 = vst.msk [vmem:[#allocation4 + $0x4] sm:$0xf] %vm832, %v842
          $region72: #{mixture_net_forward.1} parent=63 // pred_fallthru
            _
          %p844 = scmp.eq.s32.totalorder %s26, 1
          // Predicated region
          $region77: #{mixture_net_forward.1} parent=63 // pred_check
            %p845 = pneg %p844
          $region78: #{mixture_net_forward.1} parent=63 // pred_check_branch
            %847 = sbr.rel (%p845) target = $region80
          $region79: #{mixture_net_forward.1} parent=63 // pred_region
            %p848 = scmp.eq.s32.totalorder %s27, 0
            // Predicated region
            $region81: #{mixture_net_forward.1} parent=79 // pred_check
              %p849 = pneg %p848
            $region82: #{mixture_net_forward.1} parent=79 // pred_check_branch
              %851 = sbr.rel (%p849) target = $region84
            $region83: #{mixture_net_forward.1} parent=79 // pred_region
              %v852 = vld [vmem:[#allocation4] sm:$0xf]
              %v853 = vld [vmem:[#allocation4 + $0x4] sm:$0xf]
              %v854 = vmul.f32 %v852, 0.00390625
              %v855 = vmul.f32 %v853, 0.00390625
              %v856 = vmul.f32 %v854, %v854
              %v857 = vsub.f32 %v855, %v856
              %v858 = vmax.f32 %v857, 0.0
              %v859 = vld [vmem:[%s3 + $0x8] sm:$0xf]
              %v860 = vadd.f32 %v858, 1e-05
              %v861 = vrsqrt.pop %v860
              %863 = vrot.lane.b32.xlu0 %v861, 1
              %v864 = vpop.permute.xlu0 %863
              %v866 = vmul.f32 %v859, %v864
              %868 = vrot.lane.b32.xlu0 %v866, 127
              %v869 = vpop.permute.xlu0 %868
              %vm871 = vcmask 3072
              %872 = vst.msk [vmem:[#allocation4] sm:$0xf] %vm871, %v869
              %v873 = vmul.f32 %v854, %v869
              %875 = vrot.lane.b32.xlu0 %v873, 2
              %v876 = vpop.permute.xlu0 %875
              %v878 = vsub.f32 %v859, %v876
              %880 = vrot.lane.b32.xlu0 %v878, 126
              %v881 = vpop.permute.xlu0 %880
              %883 = vst.msk [vmem:[#allocation4 + $0x4] sm:$0xf] %vm871, %v881
            $region84: #{mixture_net_forward.1} parent=79 // pred_fallthru
              _
            %v884 = vld [vmem:[#allocation4] sm:$0xf]
            %886 = vset.pattern.permute.xlu0 0
            %887 = vperm.xlu0 %886, %v884
            %v888 = vpop.permute.xlu0 %887
            %v890 = vmul.f32 %v811, %v888
            %v891 = vmul.f32 %v812, %v888
            %v892 = vld [vmem:[#allocation4 + $0x4] sm:$0xf]
            %894 = vset.pattern.permute.xlu0 0
            %895 = vperm.xlu0 %894, %v892
            %v896 = vpop.permute.xlu0 %895
            %v898 = vadd.f32 %v890, %v896
            %v899 = vadd.f32 %v891, %v896
            %v900 = vmax.f32 %v898, 0.0
            %v901 = vmax.f32 %v899, 0.0
            %v904 = vcombine.low %v900, %v901
            %906 = vst [vmem:[%s258] sm:$0xff] %v904
          $region80: #{mixture_net_forward.1} parent=63 // pred_fallthru
            _
        $region64: #{mixture_net_forward.1} parent=35 // pred_fallthru
          _
        %s907 = sand.u32 %s159, 1
        %s908 = scalar_lea.sflag [#allocation7], %s907
        %s909 = sand.u32 %s159, 1
        %s910 = smul.addr %s909, 8
        %s911 = scalar_lea.vmem [#allocation6], %s910
        // Predicated region
        $region85: #{mixture_net_forward.1} parent=35 // pred_check
          %p912 = pneg %p169
        $region86: #{mixture_net_forward.1} parent=35 // pred_check_branch
          %914 = sbr.rel (%p912) target = $region88
        $region87: #{mixture_net_forward.1} parent=35 // pred_region
          %p915 = scmp.eq.s32.totalorder %s25, 1
          %p916 = scmp.eq.s32.totalorder %s26, 1
          %p917 = pnand %p915, %p916
          %p918 = pneg %p917
          %s919 = scalar_select %p918, %s27, 0
          %s920 = smul.u32 2, %s919
          %s922 = ssub.s32 128, 128
          %923 = vsyncadd %s908, %s922
          %s924 = smul.addr %s920, 64
          %s925 = scalar_lea.hbm %s4, %s924
          %s927 = sshll.u32 %s911, 4
          %s928 = int_to_ptr.vmem [resolvable:$true] %s927
          %930 = dma.vmem_to_hbm [thread:$0]  %s928, 128, %s925, %s908
        $region88: #{mixture_net_forward.1} parent=35 // pred_fallthru
          _
      $region36: #{mixture_net_forward.1} parent=5 // pred_fallthru
        _
      %p931 = scmp.le.s32.totalorder 2, %s15
      // Predicated region
      $region89: #{mixture_net_forward.1} parent=5 // pred_check
        %p932 = pneg %p931
      $region90: #{mixture_net_forward.1} parent=5 // pred_check_branch
        %934 = sbr.rel (%p932) target = $region92
      $region91: #{mixture_net_forward.1} parent=5 // pred_region
        %s935 = ssub.s32 %s15, 2
        // Predicated region
        $region93: #{mixture_net_forward.1} parent=91 // pred_check
          %p936 = pneg %p175
        $region94: #{mixture_net_forward.1} parent=91 // pred_check_branch
          %938 = sbr.rel (%p936) target = $region96
        $region95: #{mixture_net_forward.1} parent=91 // pred_region
          %s939 = sand.u32 %s160, 1
          %s940 = scalar_lea.sflag [#allocation7], %s939
          %s941 = sand.u32 %s160, 1
          %s942 = smul.addr %s941, 8
          %s943 = scalar_lea.vmem [#allocation6], %s942
          %944 = dma.done %s940, 128
        $region96: #{mixture_net_forward.1} parent=91 // pred_fallthru
          _
      $region92: #{mixture_net_forward.1} parent=5 // pred_fallthru
        _
    $region6: #{mixture_net_forward.1} parent=1 // loop_footer
      %s19 = sadd.s32 1, %s15
    $region7: #{mixture_net_forward.1} parent=1 // loop_footer_branch
      %14 = sbr.rel target = $region3
    $region8: #{mixture_net_forward.1} parent=1 // loop_exit
      _
    %945 = vsyncpa [#allocation7], 1
    %s946 = scalar_lea.sflag [#allocation7], 1
    %947 = vsyncpa %s946, 1
  %948 = vsyncmov [#allocation5]
  %s949 = vpop.sfrf %948
  %p950 = scmp.eq.s32.totalorder %s949, 0
  %p951 = pneg %p950
  %953 = shalt.err (%p951)

</llo_original>
